<compile_context>
chip_gen: v6e
topology: v6e:2x2x1
jax: 0.10.0
libtpu: 0.0.40
codegen_flags: <defaults>
</compile_context>

<pallas_src>
import functools

import jax
import jax.numpy as jnp
from jax.experimental import pallas as pl
from jax.experimental.pallas import tpu as pltpu


def _round_up(x, m):
    return (x + m - 1) // m * m


# ----------------------------------------------------------------------------
# Kernel A — fused views, single grid step (best on single-TC v5e / v6e).
# ----------------------------------------------------------------------------
def _bird_loss_fused_kernel(tex_ref, proj_ref, ref_ref, out_ref):
    # tex_ref : (C, Kpad)      f32   texture (channel-major, K zero-padded)
    # proj_ref: (2, Kpad, HW)  bf16  view-major fused projection (contiguous)
    # ref_ref : (2, C, HW)     f32   reference pixels per view
    # out_ref : (1, 2)         f32   SMEM — per-view SSE
    tex = jnp.tanh(tex_ref[...]).astype(jnp.bfloat16)   # tanh in f32 (EUP)
    img0 = jnp.dot(tex, proj_ref[0], preferred_element_type=jnp.float32)
    img1 = jnp.dot(tex, proj_ref[1], preferred_element_type=jnp.float32)
    d0 = img0 - ref_ref[0]
    d1 = img1 - ref_ref[1]
    out_ref[0, 0] = jnp.sum(d0 * d0)
    out_ref[0, 1] = jnp.sum(d1 * d1)


# ----------------------------------------------------------------------------
# Kernel B — one view per grid step, grid=(2,) "parallel" (v7x: one view per
# TensorCore).  Each step is a single full-K dot; proj block is contiguous.
# ----------------------------------------------------------------------------
def _bird_loss_view_kernel(tex_ref, proj_ref, ref_ref, out_ref):
    # tex_ref : (C, Kpad)      f32   (same block every step — stays resident)
    # proj_ref: (1, Kpad, HW)  bf16  (this view)
    # ref_ref : (1, C, HW)     f32   (this view)
    # out_ref : (1, 1)         f32   SMEM — this view's SSE
    tex = jnp.tanh(tex_ref[...]).astype(jnp.bfloat16)
    img = jnp.dot(tex, proj_ref[0], preferred_element_type=jnp.float32)
    d = img - ref_ref[0]
    out_ref[0, 0] = jnp.sum(d * d)


def _has_two_tensorcores():
    # v7x has 2 TensorCores per chip; v5e / v6e have 1.
    try:
        kind = jax.devices()[0].device_kind.lower()
    except Exception:
        return False
    return "v7" in kind


@functools.partial(jax.jit, static_argnames=("split_views",))
def _bird_loss_impl(textures, proj_vm, refs_vm, *, split_views):
    """textures: (1, F, T, T, T, 3) f32  (the nn.Parameter)
       proj_vm : (2, Kpad, HW) bf16 — view-major splat matrices, rows
                 K..Kpad-1 zero-padded (fixed "renderer" state).
       refs_vm : (2, 3, HW) f32 — [image_ref, image_ref_flip], NCHW-flat."""
    _, F, T, _, _, C = textures.shape
    K = F * T * T * T
    nviews, Kpad, HW = proj_vm.shape
    assert nviews == 2 and C == 3
    assert refs_vm.shape == (2, C, HW)
    assert HW % 128 == 0, "pixel axis must be lane-aligned"
    assert Kpad % 8 == 0 and Kpad >= K
    # TODO(synk): at the real renderer resolution (H=W=256 -> HW=65536) the
    # per-view proj block exceeds VMEM; add a "parallel" pixel-tiling grid
    # axis (2k-8k lane tiles) before scaling beyond toy sizes.
    assert 2 * Kpad * HW * 2 < 16 * 1024 * 1024, "add pixel tiling first"

    # (1,F,T,T,T,3) -> (3, Kpad): channel-major, K zero-padded (tanh(0)=0 and
    # the padded proj rows are zero, so padding contributes nothing).
    tex_flat = jnp.transpose(textures.reshape(K, C), (1, 0))
    tex_flat = jnp.pad(tex_flat, ((0, 0), (0, Kpad - K)))

    flops = 2 * C * Kpad * (2 * HW)
    bytes_accessed = (2 * Kpad * HW * 2      # proj (bf16)
                      + C * Kpad * 4         # texture (f32)
                      + 2 * C * HW * 4       # references (f32)
                      + 8)                   # scalar outputs

    if split_views:
        partials = pl.pallas_call(
            _bird_loss_view_kernel,
            out_shape=jax.ShapeDtypeStruct((1, 2), jnp.float32),
            grid_spec=pltpu.PrefetchScalarGridSpec(
                num_scalar_prefetch=0,
                grid=(2,),
                in_specs=[
                    pl.BlockSpec((C, Kpad), lambda i: (0, 0)),       # texture
                    pl.BlockSpec((1, Kpad, HW), lambda i: (i, 0, 0)),  # proj
                    pl.BlockSpec((1, C, HW), lambda i: (i, 0, 0)),   # refs
                ],
                out_specs=pl.BlockSpec(
                    (1, 1), lambda i: (0, i),
                    memory_space=pltpu.MemorySpace.SMEM),
            ),
            compiler_params=pltpu.CompilerParams(
                dimension_semantics=("parallel",),
                vmem_limit_bytes=32 * 1024 * 1024),
            cost_estimate=pl.CostEstimate(
                flops=int(flops),
                transcendentals=int(2 * C * Kpad),  # tanh recomputed per view
                bytes_accessed=int(bytes_accessed + C * Kpad * 4)),
        )(tex_flat, proj_vm, refs_vm)
    else:
        partials = pl.pallas_call(
            _bird_loss_fused_kernel,
            out_shape=jax.ShapeDtypeStruct((1, 2), jnp.float32),
            grid_spec=pltpu.PrefetchScalarGridSpec(
                num_scalar_prefetch=0,
                grid=(1,),
                in_specs=[
                    pl.BlockSpec((C, Kpad), lambda i: (0, 0)),        # texture
                    pl.BlockSpec((2, Kpad, HW), lambda i: (0, 0, 0)),  # proj
                    pl.BlockSpec((2, C, HW), lambda i: (0, 0, 0)),    # refs
                ],
                out_specs=pl.BlockSpec(
                    (1, 2), lambda i: (0, 0),
                    memory_space=pltpu.MemorySpace.SMEM),
            ),
            compiler_params=pltpu.CompilerParams(
                dimension_semantics=("arbitrary",),
                vmem_limit_bytes=32 * 1024 * 1024),
            cost_estimate=pl.CostEstimate(
                flops=int(flops),
                transcendentals=int(C * Kpad),
                bytes_accessed=int(bytes_accessed)),
        )(tex_flat, proj_vm, refs_vm)

    # loss = (loss_one_side + loss_symmetric) / 2
    return (partials[0, 0] + partials[0, 1]) * 0.5


def bird_loss(textures, proj_vm, refs_vm, split_views=None):
    if split_views is None:
        split_views = _has_two_tensorcores()
    return _bird_loss_impl(textures, proj_vm, refs_vm,
                           split_views=bool(split_views))


# ----------------------------------------------------------------------------
# Pure-JAX f32 reference (correctness check only)
# ----------------------------------------------------------------------------
def bird_loss_ref(textures, proj1, proj2, image_ref, image_ref_flip):
    _, F, T, _, _, C = textures.shape
    K = F * T * T * T
    _, _, H, W = image_ref.shape
    tex = jnp.transpose(jnp.tanh(textures.reshape(K, C)), (1, 0))
    img1 = tex @ proj1
    img2 = tex @ proj2
    l1 = jnp.sum((img1 - image_ref.reshape(C, H * W)) ** 2)
    l2 = jnp.sum((img2 - image_ref_flip.reshape(C, H * W)) ** 2)
    return (l1 + l2) / 2.0


if __name__ == "__main__":
    # Small shapes consistent with the module's structure:
    #   faces F=8, texture_size T=6 (as in the module), image 3 x 16 x 16.
    F, T, C = 8, 6, 3
    H = W = 16
    K = F * T * T * T            # 1728
    Kpad = _round_up(K, 128)     # 1792
    HW = H * W                   # 256

    key = jax.random.PRNGKey(0)
    k_tex, k_ref, k_p1, k_p2 = jax.random.split(key, 4)

    # Parameter: the module initializes zeros; use nonzero values here so the
    # tanh/matmul paths are actually exercised numerically.
    textures = 0.5 * jax.random.normal(k_tex, (1, F, T, T, T, C), jnp.float32)

    # Reference image (stands in for imread(filename_ref)/255) and its fliplr.
    image_ref = jax.random.uniform(k_ref, (1, C, H, W), dtype=jnp.float32)
    image_ref_flip = jnp.flip(image_ref, axis=-1)

    # TODO(synk): nr.Renderer's rasterization (vertex transform + z-buffer
    # rasterize + texture sampling) has no clean Pallas equivalent; replaced
    # by deterministic per-view linear splat matrices.
    proj1 = 0.01 * jax.random.normal(k_p1, (K, HW), dtype=jnp.float32)
    proj2 = 0.01 * jax.random.normal(k_p2, (K, HW), dtype=jnp.float32)

    # Fixed "renderer" state, prepared once: VIEW-MAJOR layout so every
    # per-view DMA is contiguous; K zero-padded; streamed in bf16.
    proj_vm = jnp.stack([proj1, proj2], axis=0)                      # (2,K,HW)
    proj_vm = jnp.pad(proj_vm, ((0, 0), (0, Kpad - K), (0, 0)))
    proj_vm = proj_vm.astype(jnp.bfloat16)                           # (2,Kpad,HW)
    refs_vm = jnp.stack(
        [image_ref.reshape(C, HW), image_ref_flip.reshape(C, HW)], axis=0)

    # Auto-selected variant (fused on single-TC chips, view-parallel on v7x).
    loss = jax.block_until_ready(bird_loss(textures, proj_vm, refs_vm))

    # Exercise both code paths for correctness regardless of chip.
    loss_fused = jax.block_until_ready(
        bird_loss(textures, proj_vm, refs_vm, split_views=False))
    loss_split = jax.block_until_ready(
        bird_loss(textures, proj_vm, refs_vm, split_views=True))

    loss_expected = bird_loss_ref(textures, proj1, proj2, image_ref,
                                  image_ref_flip)
    # proj is streamed in bf16 inside the kernel -> loosened tolerance vs f32.
    for name, val in (("auto", loss), ("fused", loss_fused),
                      ("split", loss_split)):
        assert jnp.allclose(val, loss_expected, rtol=2e-2, atol=1e-2), (
            name, val, loss_expected)

    print("KERNEL_OK")
</pallas_src>

<mosaic_0001>
module attributes {stable_mosaic.version = 11 : i64} {
  func.func @_bird_loss_fused_kernel(%arg0: i32, %arg1: memref<3x1792xf32, #tpu.memory_space<vmem>>, %arg2: memref<2x1792x256xbf16, #tpu.memory_space<vmem>>, %arg3: memref<2x3x256xf32, #tpu.memory_space<vmem>>, %arg4: memref<1x2xf32, #tpu.memory_space<smem>>) attributes {dimension_semantics = [#tpu.dimension_semantics<arbitrary>], iteration_bounds = array<i64: 1>, scalar_prefetch = 0 : i64, scratch_operands = 0 : i64, tpu.core_type = #tpu.core_type<tc>, window_params = [{pipeline_mode = #tpu.pipeline_mode<synchronous>, transform_indices = @transform_0, window_bounds = array<i64: 3, 1792>}, {pipeline_mode = #tpu.pipeline_mode<synchronous>, transform_indices = @transform_1, window_bounds = array<i64: 2, 1792, 256>}, {pipeline_mode = #tpu.pipeline_mode<synchronous>, transform_indices = @transform_2, window_bounds = array<i64: 2, 3, 256>}, {transform_indices = @transform_3, window_bounds = array<i64: 1, 2>}]} {
    %c0 = arith.constant 0 : index
    %c0_0 = arith.constant 0 : index
    %0 = vector.load %arg1[%c0, %c0_0] : memref<3x1792xf32, #tpu.memory_space<vmem>>, vector<3x1792xf32>
    %1 = math.tanh %0 : vector<3x1792xf32>
    %2 = arith.truncf %1 : vector<3x1792xf32> to vector<3x1792xbf16>
    %c0_1 = arith.constant 0 : index
    %c0_2 = arith.constant 0 : index
    %c0_3 = arith.constant 0 : index
    %3 = vector.load %arg2[%c0_1, %c0_2, %c0_3] : memref<2x1792x256xbf16, #tpu.memory_space<vmem>>, vector<1x1792x256xbf16>
    %4 = vector.shape_cast %3 : vector<1x1792x256xbf16> to vector<1792x256xbf16>
    %cst = arith.constant dense<0.000000e+00> : vector<3x256xf32>
    %5 = tpu.matmul %2, %4, %cst {dimension_numbers = #tpu.dot_dimension_numbers<[1], [0], [0], [1], [0, 0, 1, 1], [], []>} : vector<3x1792xbf16>, vector<1792x256xbf16>, vector<3x256xf32> -> vector<3x256xf32>
    %c1 = arith.constant 1 : index
    %c0_4 = arith.constant 0 : index
    %c0_5 = arith.constant 0 : index
    %6 = vector.load %arg2[%c1, %c0_4, %c0_5] : memref<2x1792x256xbf16, #tpu.memory_space<vmem>>, vector<1x1792x256xbf16>
    %7 = vector.shape_cast %6 : vector<1x1792x256xbf16> to vector<1792x256xbf16>
    %cst_6 = arith.constant dense<0.000000e+00> : vector<3x256xf32>
    %8 = tpu.matmul %2, %7, %cst_6 {dimension_numbers = #tpu.dot_dimension_numbers<[1], [0], [0], [1], [0, 0, 1, 1], [], []>} : vector<3x1792xbf16>, vector<1792x256xbf16>, vector<3x256xf32> -> vector<3x256xf32>
    %c0_7 = arith.constant 0 : index
    %c0_8 = arith.constant 0 : index
    %c0_9 = arith.constant 0 : index
    %9 = vector.load %arg3[%c0_7, %c0_8, %c0_9] : memref<2x3x256xf32, #tpu.memory_space<vmem>>, vector<1x3x256xf32>
    %10 = vector.shape_cast %9 : vector<1x3x256xf32> to vector<3x256xf32>
    %11 = arith.subf %5, %10 : vector<3x256xf32>
    %c1_10 = arith.constant 1 : index
    %c0_11 = arith.constant 0 : index
    %c0_12 = arith.constant 0 : index
    %12 = vector.load %arg3[%c1_10, %c0_11, %c0_12] : memref<2x3x256xf32, #tpu.memory_space<vmem>>, vector<1x3x256xf32>
    %13 = vector.shape_cast %12 : vector<1x3x256xf32> to vector<3x256xf32>
    %14 = arith.subf %8, %13 : vector<3x256xf32>
    %15 = arith.mulf %11, %11 : vector<3x256xf32>
    %16 = vector.shape_cast %15 : vector<3x256xf32> to vector<1x3x256xf32>
    %cst_13 = arith.constant dense<0.000000e+00> : vector<1xf32>
    %17 = vector.multi_reduction <add>, %16, %cst_13 [1, 2] : vector<1x3x256xf32> to vector<1xf32>
    %18 = vector.shape_cast %17 : vector<1xf32> to vector<1x1x1xf32>
    %19 = vector.extract %18[0, 0, 0] : f32 from vector<1x1x1xf32>
    %c0_14 = arith.constant 0 : index
    %c0_15 = arith.constant 0 : index
    %20 = memref.load %arg4[%c0_14, %c0_15] : memref<1x2xf32, #tpu.memory_space<smem>>
    memref.store %19, %arg4[%c0_14, %c0_15] : memref<1x2xf32, #tpu.memory_space<smem>>
    %21 = arith.mulf %14, %14 : vector<3x256xf32>
    %22 = vector.shape_cast %21 : vector<3x256xf32> to vector<1x3x256xf32>
    %cst_16 = arith.constant dense<0.000000e+00> : vector<1xf32>
    %23 = vector.multi_reduction <add>, %22, %cst_16 [1, 2] : vector<1x3x256xf32> to vector<1xf32>
    %24 = vector.shape_cast %23 : vector<1xf32> to vector<1x1x1xf32>
    %25 = vector.extract %24[0, 0, 0] : f32 from vector<1x1x1xf32>
    %c0_17 = arith.constant 0 : index
    %c1_18 = arith.constant 1 : index
    %26 = memref.load %arg4[%c0_17, %c1_18] : memref<1x2xf32, #tpu.memory_space<smem>>
    memref.store %25, %arg4[%c0_17, %c1_18] : memref<1x2xf32, #tpu.memory_space<smem>>
    return
  }
  func.func @transform_0(%arg0: i32) -> (i32, i32) {
    %c0_i32 = arith.constant 0 : i32
    %c0_i32_0 = arith.constant 0 : i32
    %c0_i32_1 = arith.constant 0 : i32
    return %c0_i32, %c0_i32_0 : i32, i32
  }
  func.func @transform_1(%arg0: i32) -> (i32, i32, i32) {
    %c0_i32 = arith.constant 0 : i32
    %c0_i32_0 = arith.constant 0 : i32
    %c0_i32_1 = arith.constant 0 : i32
    %c0_i32_2 = arith.constant 0 : i32
    return %c0_i32, %c0_i32_0, %c0_i32_1 : i32, i32, i32
  }
  func.func @transform_2(%arg0: i32) -> (i32, i32, i32) {
    %c0_i32 = arith.constant 0 : i32
    %c0_i32_0 = arith.constant 0 : i32
    %c0_i32_1 = arith.constant 0 : i32
    %c0_i32_2 = arith.constant 0 : i32
    return %c0_i32, %c0_i32_0, %c0_i32_1 : i32, i32, i32
  }
  func.func @transform_3(%arg0: i32) -> (i32, i32) {
    %c0_i32 = arith.constant 0 : i32
    %c0_i32_0 = arith.constant 0 : i32
    %c0_i32_1 = arith.constant 0 : i32
    return %c0_i32, %c0_i32_0 : i32, i32
  }
}

</mosaic_0001>

<llo_original>
// kernel: _bird_loss_impl.1
$region0: #{_bird_loss_impl.1}
  #allocation0 [shape = 'u32[]', space=smem, size = 0x4, offset = 0x4, fixed_abs, tag = 'smem constant byte address 0x4 - core index']
  #allocation1 [shape = 'u32[144,128]{1,0:T(1,128)}', space=vmem, size = 0x12000, scoped, tag = 'internal scratch']
  %s0 = inlined_call_operand.vmem [shape: f32[3,1792], index: 0, kind: input, shape index: {}]
  %s1 = inlined_call_operand.hbm [shape: bf16[2,1792,256], index: 1, kind: input, shape index: {}]
  %s2 = inlined_call_operand.vmem [shape: f32[2,3,256], index: 2, kind: input, shape index: {}]
  %s3 = inlined_call_operand.vmem [shape: f32[1,2], index: 3, kind: output, shape index: {}]
  %s4 = sld [smem:[#allocation0]]
  $region26: #{_bird_loss_impl.1} parent=0
    _
  %s6 = ssub.s32 1, %s4
  %s7 = scalar_select 0, %s6, %s4
  $region1: #{_bird_loss_impl.1} parent=0
    #allocation2 [shape = 'u8[1835008]{0}', space=vmem, size = 0x1c0000, scoped, tag = 'input window, operand 1, single buffered']
    #allocation3 [shape = 's32[1]{0}', space=sflag, size = 0x4, scoped, tag = 'scoped memory for _bird_loss_impl.1']
    #allocation4 [shape = 's32[1]{0}', space=sflag, size = 0x4, scoped, tag = 'scoped memory for _bird_loss_impl.1']
    #allocation5 [shape = 'u8[512]{0}', space=smem, size = 0x200, scoped, tag = 'output window, operand 0, single buffered']
    %8 = vsyncpa [#allocation3], 0
    %9 = vsyncpa [#allocation4], 0
    // Predicated region
    $region2: #{_bird_loss_impl.1} parent=1 // pred_check
      _
    $region3: #{_bird_loss_impl.1} parent=1 // pred_check_branch
      %11 = sbr.rel (0) target = $region5
    $region4: #{_bird_loss_impl.1} parent=1 // pred_region
      _
    $region5: #{_bird_loss_impl.1} parent=1 // pred_fallthru
      _
    // Predicated region
    $region6: #{_bird_loss_impl.1} parent=1 // pred_check
      _
    $region7: #{_bird_loss_impl.1} parent=1 // pred_check_branch
      %13 = sbr.rel (0) target = $region9
    $region8: #{_bird_loss_impl.1} parent=1 // pred_region
      %s15 = ssub.s32 57344, 57344
      %16 = vsyncadd [#allocation3], %s15
      %s17 = sshll.u32 [#allocation2], 4
      %s18 = int_to_ptr.vmem [resolvable:$true] %s17
      %23 = dma.hbm_to_vmem [thread:$0]  %s1, 57344, %s18, [#allocation3], 128, 128, 8
    $region9: #{_bird_loss_impl.1} parent=1 // pred_fallthru
      _
    // Predicated region
    $region10: #{_bird_loss_impl.1} parent=1 // pred_check
      _
    $region11: #{_bird_loss_impl.1} parent=1 // pred_check_branch
      %25 = sbr.rel (0) target = $region13
    $region12: #{_bird_loss_impl.1} parent=1 // pred_region
      _
    $region13: #{_bird_loss_impl.1} parent=1 // pred_fallthru
      _
    // Predicated region
    $region14: #{_bird_loss_impl.1} parent=1 // pred_check
      _
    $region15: #{_bird_loss_impl.1} parent=1 // pred_check_branch
      %27 = sbr.rel (0) target = $region17
    $region16: #{_bird_loss_impl.1} parent=1 // pred_region
      %28 = dma.done [#allocation3], 57344
    $region17: #{_bird_loss_impl.1} parent=1 // pred_fallthru
      _
    %v29 = vld [vmem:[%s0] sm:$0x77]
    %v30 = vld [vmem:[%s0 + $0x8] sm:$0x77]
    %v31 = vld [vmem:[%s0 + $0x10] sm:$0x77]
    %v32 = vld [vmem:[%s0 + $0x18] sm:$0x77]
    %v33 = vld [vmem:[%s0 + $0x20] sm:$0x77]
    %v34 = vld [vmem:[%s0 + $0x28] sm:$0x77]
    %v35 = vld [vmem:[%s0 + $0x30] sm:$0x77]
    %v36 = vtanh.pop %v29
    %v37 = vtanh.pop %v30
    %v38 = vtanh.pop %v31
    %v39 = vtanh.pop %v32
    %v40 = vtanh.pop %v33
    %v41 = vtanh.pop %v34
    %v42 = vtanh.pop %v35
    %v50 = vcombine.high %v36, %v36
    %v51 = vcombine.high %v37, %v37
    %v52 = vcombine.high %v38, %v38
    %v53 = vcombine.high %v39, %v39
    %v54 = vcombine.high %v40, %v40
    %v55 = vcombine.high %v41, %v41
    %v56 = vcombine.high %v42, %v42
    %v64 = vpack.c.bf16 %v36, %v36
    %v65 = vpack.c.bf16 %v50, %v50
    %v66 = vpack.c.bf16 %v37, %v37
    %v67 = vpack.c.bf16 %v51, %v51
    %v68 = vpack.c.bf16 %v38, %v38
    %v69 = vpack.c.bf16 %v52, %v52
    %v70 = vpack.c.bf16 %v39, %v39
    %v71 = vpack.c.bf16 %v53, %v53
    %v72 = vpack.c.bf16 %v40, %v40
    %v73 = vpack.c.bf16 %v54, %v54
    %v74 = vpack.c.bf16 %v41, %v41
    %v75 = vpack.c.bf16 %v55, %v55
    %v76 = vpack.c.bf16 %v42, %v42
    %v77 = vpack.c.bf16 %v56, %v56
    %v78 = vld [vmem:[#allocation2] sm:$0xff]
    %v79 = vld [vmem:[#allocation2 + $0x8] sm:$0xff]
    %v80 = vld [vmem:[#allocation2 + $0x10] sm:$0xff]
    %v81 = vld [vmem:[#allocation2 + $0x18] sm:$0xff]
    %v82 = vld [vmem:[#allocation2 + $0x20] sm:$0xff]
    %v83 = vld [vmem:[#allocation2 + $0x28] sm:$0xff]
    %v84 = vld [vmem:[#allocation2 + $0x30] sm:$0xff]
    %v85 = vld [vmem:[#allocation2 + $0x38] sm:$0xff]
    %v86 = vld [vmem:[#allocation2 + $0x40] sm:$0xff]
    %v87 = vld [vmem:[#allocation2 + $0x48] sm:$0xff]
    %v88 = vld [vmem:[#allocation2 + $0x50] sm:$0xff]
    %v89 = vld [vmem:[#allocation2 + $0x58] sm:$0xff]
    %v90 = vld [vmem:[#allocation2 + $0x60] sm:$0xff]
    %v91 = vld [vmem:[#allocation2 + $0x68] sm:$0xff]
    %v92 = vld [vmem:[#allocation2 + $0x70] sm:$0xff]
    %v93 = vld [vmem:[#allocation2 + $0x78] sm:$0xff]
    %v94 = vld [vmem:[#allocation2 + $0x80] sm:$0xff]
    %v95 = vld [vmem:[#allocation2 + $0x88] sm:$0xff]
    %v96 = vld [vmem:[#allocation2 + $0x90] sm:$0xff]
    %v97 = vld [vmem:[#allocation2 + $0x98] sm:$0xff]
    %v98 = vld [vmem:[#allocation2 + $0xa0] sm:$0xff]
    %v99 = vld [vmem:[#allocation2 + $0xa8] sm:$0xff]
    %v100 = vld [vmem:[#allocation2 + $0xb0] sm:$0xff]
    %v101 = vld [vmem:[#allocation2 + $0xb8] sm:$0xff]
    %v102 = vld [vmem:[#allocation2 + $0xc0] sm:$0xff]
    %v103 = vld [vmem:[#allocation2 + $0xc8] sm:$0xff]
    %v104 = vld [vmem:[#allocation2 + $0xd0] sm:$0xff]
    %v105 = vld [vmem:[#allocation2 + $0xd8] sm:$0xff]
    %v106 = vld [vmem:[#allocation2 + $0xe0] sm:$0xff]
    %v107 = vld [vmem:[#allocation2 + $0xe8] sm:$0xff]
    %v108 = vld [vmem:[#allocation2 + $0xf0] sm:$0xff]
    %v109 = vld [vmem:[#allocation2 + $0xf8] sm:$0xff]
    %v110 = vld [vmem:[#allocation2 + $0x100] sm:$0xff]
    %v111 = vld [vmem:[#allocation2 + $0x108] sm:$0xff]
    %v112 = vld [vmem:[#allocation2 + $0x110] sm:$0xff]
    %v113 = vld [vmem:[#allocation2 + $0x118] sm:$0xff]
    %v114 = vld [vmem:[#allocation2 + $0x120] sm:$0xff]
    %v115 = vld [vmem:[#allocation2 + $0x128] sm:$0xff]
    %v116 = vld [vmem:[#allocation2 + $0x130] sm:$0xff]
    %v117 = vld [vmem:[#allocation2 + $0x138] sm:$0xff]
    %v118 = vld [vmem:[#allocation2 + $0x140] sm:$0xff]
    %v119 = vld [vmem:[#allocation2 + $0x148] sm:$0xff]
    %v120 = vld [vmem:[#allocation2 + $0x150] sm:$0xff]
    %v121 = vld [vmem:[#allocation2 + $0x158] sm:$0xff]
    %v122 = vld [vmem:[#allocation2 + $0x160] sm:$0xff]
    %v123 = vld [vmem:[#allocation2 + $0x168] sm:$0xff]
    %v124 = vld [vmem:[#allocation2 + $0x170] sm:$0xff]
    %v125 = vld [vmem:[#allocation2 + $0x178] sm:$0xff]
    %v126 = vld [vmem:[#allocation2 + $0x180] sm:$0xff]
    %v127 = vld [vmem:[#allocation2 + $0x188] sm:$0xff]
    %v128 = vld [vmem:[#allocation2 + $0x190] sm:$0xff]
    %v129 = vld [vmem:[#allocation2 + $0x198] sm:$0xff]
    %v130 = vld [vmem:[#allocation2 + $0x1a0] sm:$0xff]
    %v131 = vld [vmem:[#allocation2 + $0x1a8] sm:$0xff]
    %v132 = vld [vmem:[#allocation2 + $0x1b0] sm:$0xff]
    %v133 = vld [vmem:[#allocation2 + $0x1b8] sm:$0xff]
    %v134 = vld [vmem:[#allocation2 + $0x1c0] sm:$0xff]
    %v135 = vld [vmem:[#allocation2 + $0x1c8] sm:$0xff]
    %v136 = vld [vmem:[#allocation2 + $0x1d0] sm:$0xff]
    %v137 = vld [vmem:[#allocation2 + $0x1d8] sm:$0xff]
    %v138 = vld [vmem:[#allocation2 + $0x1e0] sm:$0xff]
    %v139 = vld [vmem:[#allocation2 + $0x1e8] sm:$0xff]
    %v140 = vld [vmem:[#allocation2 + $0x1f0] sm:$0xff]
    %v141 = vld [vmem:[#allocation2 + $0x1f8] sm:$0xff]
    %v142 = vld [vmem:[#allocation2 + $0x200] sm:$0xff]
    %v143 = vld [vmem:[#allocation2 + $0x208] sm:$0xff]
    %v144 = vld [vmem:[#allocation2 + $0x210] sm:$0xff]
    %v145 = vld [vmem:[#allocation2 + $0x218] sm:$0xff]
    %v146 = vld [vmem:[#allocation2 + $0x220] sm:$0xff]
    %v147 = vld [vmem:[#allocation2 + $0x228] sm:$0xff]
    %v148 = vld [vmem:[#allocation2 + $0x230] sm:$0xff]
    %v149 = vld [vmem:[#allocation2 + $0x238] sm:$0xff]
    %v150 = vld [vmem:[#allocation2 + $0x240] sm:$0xff]
    %v151 = vld [vmem:[#allocation2 + $0x248] sm:$0xff]
    %v152 = vld [vmem:[#allocation2 + $0x250] sm:$0xff]
    %v153 = vld [vmem:[#allocation2 + $0x258] sm:$0xff]
    %v154 = vld [vmem:[#allocation2 + $0x260] sm:$0xff]
    %v155 = vld [vmem:[#allocation2 + $0x268] sm:$0xff]
    %v156 = vld [vmem:[#allocation2 + $0x270] sm:$0xff]
    %v157 = vld [vmem:[#allocation2 + $0x278] sm:$0xff]
    %v158 = vld [vmem:[#allocation2 + $0x280] sm:$0xff]
    %v159 = vld [vmem:[#allocation2 + $0x288] sm:$0xff]
    %v160 = vld [vmem:[#allocation2 + $0x290] sm:$0xff]
    %v161 = vld [vmem:[#allocation2 + $0x298] sm:$0xff]
    %v162 = vld [vmem:[#allocation2 + $0x2a0] sm:$0xff]
    %v163 = vld [vmem:[#allocation2 + $0x2a8] sm:$0xff]
    %v164 = vld [vmem:[#allocation2 + $0x2b0] sm:$0xff]
    %v165 = vld [vmem:[#allocation2 + $0x2b8] sm:$0xff]
    %v166 = vld [vmem:[#allocation2 + $0x2c0] sm:$0xff]
    %v167 = vld [vmem:[#allocation2 + $0x2c8] sm:$0xff]
    %v168 = vld [vmem:[#allocation2 + $0x2d0] sm:$0xff]
    %v169 = vld [vmem:[#allocation2 + $0x2d8] sm:$0xff]
    %v170 = vld [vmem:[#allocation2 + $0x2e0] sm:$0xff]
    %v171 = vld [vmem:[#allocation2 + $0x2e8] sm:$0xff]
    %v172 = vld [vmem:[#allocation2 + $0x2f0] sm:$0xff]
    %v173 = vld [vmem:[#allocation2 + $0x2f8] sm:$0xff]
    %v174 = vld [vmem:[#allocation2 + $0x300] sm:$0xff]
    %v175 = vld [vmem:[#allocation2 + $0x308] sm:$0xff]
    %v176 = vld [vmem:[#allocation2 + $0x310] sm:$0xff]
    %v177 = vld [vmem:[#allocation2 + $0x318] sm:$0xff]
    %v178 = vld [vmem:[#allocation2 + $0x320] sm:$0xff]
    %v179 = vld [vmem:[#allocation2 + $0x328] sm:$0xff]
    %v180 = vld [vmem:[#allocation2 + $0x330] sm:$0xff]
    %v181 = vld [vmem:[#allocation2 + $0x338] sm:$0xff]
    %v182 = vld [vmem:[#allocation2 + $0x340] sm:$0xff]
    %v183 = vld [vmem:[#allocation2 + $0x348] sm:$0xff]
    %v184 = vld [vmem:[#allocation2 + $0x350] sm:$0xff]
    %v185 = vld [vmem:[#allocation2 + $0x358] sm:$0xff]
    %v186 = vld [vmem:[#allocation2 + $0x360] sm:$0xff]
    %v187 = vld [vmem:[#allocation2 + $0x368] sm:$0xff]
    %v188 = vld [vmem:[#allocation2 + $0x370] sm:$0xff]
    %v189 = vld [vmem:[#allocation2 + $0x378] sm:$0xff]
    %v190 = vld [vmem:[#allocation2 + $0x380] sm:$0xff]
    %v191 = vld [vmem:[#allocation2 + $0x388] sm:$0xff]
    %v192 = vld [vmem:[#allocation2 + $0x390] sm:$0xff]
    %v193 = vld [vmem:[#allocation2 + $0x398] sm:$0xff]
    %v194 = vld [vmem:[#allocation2 + $0x3a0] sm:$0xff]
    %v195 = vld [vmem:[#allocation2 + $0x3a8] sm:$0xff]
    %v196 = vld [vmem:[#allocation2 + $0x3b0] sm:$0xff]
    %v197 = vld [vmem:[#allocation2 + $0x3b8] sm:$0xff]
    %v198 = vld [vmem:[#allocation2 + $0x3c0] sm:$0xff]
    %v199 = vld [vmem:[#allocation2 + $0x3c8] sm:$0xff]
    %v200 = vld [vmem:[#allocation2 + $0x3d0] sm:$0xff]
    %v201 = vld [vmem:[#allocation2 + $0x3d8] sm:$0xff]
    %v202 = vld [vmem:[#allocation2 + $0x3e0] sm:$0xff]
    %v203 = vld [vmem:[#allocation2 + $0x3e8] sm:$0xff]
    %v204 = vld [vmem:[#allocation2 + $0x3f0] sm:$0xff]
    %v205 = vld [vmem:[#allocation2 + $0x3f8] sm:$0xff]
    %v206 = vld [vmem:[#allocation2 + $0x400] sm:$0xff]
    %v207 = vld [vmem:[#allocation2 + $0x408] sm:$0xff]
    %v208 = vld [vmem:[#allocation2 + $0x410] sm:$0xff]
    %v209 = vld [vmem:[#allocation2 + $0x418] sm:$0xff]
    %v210 = vld [vmem:[#allocation2 + $0x420] sm:$0xff]
    %v211 = vld [vmem:[#allocation2 + $0x428] sm:$0xff]
    %v212 = vld [vmem:[#allocation2 + $0x430] sm:$0xff]
    %v213 = vld [vmem:[#allocation2 + $0x438] sm:$0xff]
    %v214 = vld [vmem:[#allocation2 + $0x440] sm:$0xff]
    %v215 = vld [vmem:[#allocation2 + $0x448] sm:$0xff]
    %v216 = vld [vmem:[#allocation2 + $0x450] sm:$0xff]
    %v217 = vld [vmem:[#allocation2 + $0x458] sm:$0xff]
    %v218 = vld [vmem:[#allocation2 + $0x460] sm:$0xff]
    %v219 = vld [vmem:[#allocation2 + $0x468] sm:$0xff]
    %v220 = vld [vmem:[#allocation2 + $0x470] sm:$0xff]
    %v221 = vld [vmem:[#allocation2 + $0x478] sm:$0xff]
    %v222 = vld [vmem:[#allocation2 + $0x480] sm:$0xff]
    %v223 = vld [vmem:[#allocation2 + $0x488] sm:$0xff]
    %v224 = vld [vmem:[#allocation2 + $0x490] sm:$0xff]
    %v225 = vld [vmem:[#allocation2 + $0x498] sm:$0xff]
    %v226 = vld [vmem:[#allocation2 + $0x4a0] sm:$0xff]
    %v227 = vld [vmem:[#allocation2 + $0x4a8] sm:$0xff]
    %v228 = vld [vmem:[#allocation2 + $0x4b0] sm:$0xff]
    %v229 = vld [vmem:[#allocation2 + $0x4b8] sm:$0xff]
    %v230 = vld [vmem:[#allocation2 + $0x4c0] sm:$0xff]
    %v231 = vld [vmem:[#allocation2 + $0x4c8] sm:$0xff]
    %v232 = vld [vmem:[#allocation2 + $0x4d0] sm:$0xff]
    %v233 = vld [vmem:[#allocation2 + $0x4d8] sm:$0xff]
    %v234 = vld [vmem:[#allocation2 + $0x4e0] sm:$0xff]
    %v235 = vld [vmem:[#allocation2 + $0x4e8] sm:$0xff]
    %v236 = vld [vmem:[#allocation2 + $0x4f0] sm:$0xff]
    %v237 = vld [vmem:[#allocation2 + $0x4f8] sm:$0xff]
    %v238 = vld [vmem:[#allocation2 + $0x500] sm:$0xff]
    %v239 = vld [vmem:[#allocation2 + $0x508] sm:$0xff]
    %v240 = vld [vmem:[#allocation2 + $0x510] sm:$0xff]
    %v241 = vld [vmem:[#allocation2 + $0x518] sm:$0xff]
    %v242 = vld [vmem:[#allocation2 + $0x520] sm:$0xff]
    %v243 = vld [vmem:[#allocation2 + $0x528] sm:$0xff]
    %v244 = vld [vmem:[#allocation2 + $0x530] sm:$0xff]
    %v245 = vld [vmem:[#allocation2 + $0x538] sm:$0xff]
    %v246 = vld [vmem:[#allocation2 + $0x540] sm:$0xff]
    %v247 = vld [vmem:[#allocation2 + $0x548] sm:$0xff]
    %v248 = vld [vmem:[#allocation2 + $0x550] sm:$0xff]
    %v249 = vld [vmem:[#allocation2 + $0x558] sm:$0xff]
    %v250 = vld [vmem:[#allocation2 + $0x560] sm:$0xff]
    %v251 = vld [vmem:[#allocation2 + $0x568] sm:$0xff]
    %v252 = vld [vmem:[#allocation2 + $0x570] sm:$0xff]
    %v253 = vld [vmem:[#allocation2 + $0x578] sm:$0xff]
    %v254 = vld [vmem:[#allocation2 + $0x580] sm:$0xff]
    %v255 = vld [vmem:[#allocation2 + $0x588] sm:$0xff]
    %v256 = vld [vmem:[#allocation2 + $0x590] sm:$0xff]
    %v257 = vld [vmem:[#allocation2 + $0x598] sm:$0xff]
    %v258 = vld [vmem:[#allocation2 + $0x5a0] sm:$0xff]
    %v259 = vld [vmem:[#allocation2 + $0x5a8] sm:$0xff]
    %v260 = vld [vmem:[#allocation2 + $0x5b0] sm:$0xff]
    %v261 = vld [vmem:[#allocation2 + $0x5b8] sm:$0xff]
    %v262 = vld [vmem:[#allocation2 + $0x5c0] sm:$0xff]
    %v263 = vld [vmem:[#allocation2 + $0x5c8] sm:$0xff]
    %v264 = vld [vmem:[#allocation2 + $0x5d0] sm:$0xff]
    %v265 = vld [vmem:[#allocation2 + $0x5d8] sm:$0xff]
    %v266 = vld [vmem:[#allocation2 + $0x5e0] sm:$0xff]
    %v267 = vld [vmem:[#allocation2 + $0x5e8] sm:$0xff]
    %v268 = vld [vmem:[#allocation2 + $0x5f0] sm:$0xff]
    %v269 = vld [vmem:[#allocation2 + $0x5f8] sm:$0xff]
    %v270 = vld [vmem:[#allocation2 + $0x600] sm:$0xff]
    %v271 = vld [vmem:[#allocation2 + $0x608] sm:$0xff]
    %v272 = vld [vmem:[#allocation2 + $0x610] sm:$0xff]
    %v273 = vld [vmem:[#allocation2 + $0x618] sm:$0xff]
    %v274 = vld [vmem:[#allocation2 + $0x620] sm:$0xff]
    %v275 = vld [vmem:[#allocation2 + $0x628] sm:$0xff]
    %v276 = vld [vmem:[#allocation2 + $0x630] sm:$0xff]
    %v277 = vld [vmem:[#allocation2 + $0x638] sm:$0xff]
    %v278 = vld [vmem:[#allocation2 + $0x640] sm:$0xff]
    %v279 = vld [vmem:[#allocation2 + $0x648] sm:$0xff]
    %v280 = vld [vmem:[#allocation2 + $0x650] sm:$0xff]
    %v281 = vld [vmem:[#allocation2 + $0x658] sm:$0xff]
    %v282 = vld [vmem:[#allocation2 + $0x660] sm:$0xff]
    %v283 = vld [vmem:[#allocation2 + $0x668] sm:$0xff]
    %v284 = vld [vmem:[#allocation2 + $0x670] sm:$0xff]
    %v285 = vld [vmem:[#allocation2 + $0x678] sm:$0xff]
    %v286 = vld [vmem:[#allocation2 + $0x680] sm:$0xff]
    %v287 = vld [vmem:[#allocation2 + $0x688] sm:$0xff]
    %v288 = vld [vmem:[#allocation2 + $0x690] sm:$0xff]
    %v289 = vld [vmem:[#allocation2 + $0x698] sm:$0xff]
    %v290 = vld [vmem:[#allocation2 + $0x6a0] sm:$0xff]
    %v291 = vld [vmem:[#allocation2 + $0x6a8] sm:$0xff]
    %v292 = vld [vmem:[#allocation2 + $0x6b0] sm:$0xff]
    %v293 = vld [vmem:[#allocation2 + $0x6b8] sm:$0xff]
    %v294 = vld [vmem:[#allocation2 + $0x6c0] sm:$0xff]
    %v295 = vld [vmem:[#allocation2 + $0x6c8] sm:$0xff]
    %v296 = vld [vmem:[#allocation2 + $0x6d0] sm:$0xff]
    %v297 = vld [vmem:[#allocation2 + $0x6d8] sm:$0xff]
    %v298 = vld [vmem:[#allocation2 + $0x6e0] sm:$0xff]
    %v299 = vld [vmem:[#allocation2 + $0x6e8] sm:$0xff]
    %v300 = vld [vmem:[#allocation2 + $0x6f0] sm:$0xff]
    %v301 = vld [vmem:[#allocation2 + $0x6f8] sm:$0xff]
    %v526 = vunpack.c.l.b16 %v78
    %v527 = vunpack.c.h.b16 %v78
    %v528 = vunpack.c.l.b16 %v79
    %v529 = vunpack.c.h.b16 %v79
    %v530 = vunpack.c.l.b16 %v80
    %v531 = vunpack.c.h.b16 %v80
    %v532 = vunpack.c.l.b16 %v81
    %v533 = vunpack.c.h.b16 %v81
    %v534 = vunpack.c.l.b16 %v82
    %v535 = vunpack.c.h.b16 %v82
    %v536 = vunpack.c.l.b16 %v83
    %v537 = vunpack.c.h.b16 %v83
    %v538 = vunpack.c.l.b16 %v84
    %v539 = vunpack.c.h.b16 %v84
    %v540 = vunpack.c.l.b16 %v85
    %v541 = vunpack.c.h.b16 %v85
    %v542 = vunpack.c.l.b16 %v86
    %v543 = vunpack.c.h.b16 %v86
    %v544 = vunpack.c.l.b16 %v87
    %v545 = vunpack.c.h.b16 %v87
    %v546 = vunpack.c.l.b16 %v88
    %v547 = vunpack.c.h.b16 %v88
    %v548 = vunpack.c.l.b16 %v89
    %v549 = vunpack.c.h.b16 %v89
    %v550 = vunpack.c.l.b16 %v90
    %v551 = vunpack.c.h.b16 %v90
    %v552 = vunpack.c.l.b16 %v91
    %v553 = vunpack.c.h.b16 %v91
    %v554 = vunpack.c.l.b16 %v92
    %v555 = vunpack.c.h.b16 %v92
    %v556 = vunpack.c.l.b16 %v93
    %v557 = vunpack.c.h.b16 %v93
    %v558 = vunpack.c.l.b16 %v94
    %v559 = vunpack.c.h.b16 %v94
    %v560 = vunpack.c.l.b16 %v95
    %v561 = vunpack.c.h.b16 %v95
    %v562 = vunpack.c.l.b16 %v96
    %v563 = vunpack.c.h.b16 %v96
    %v564 = vunpack.c.l.b16 %v97
    %v565 = vunpack.c.h.b16 %v97
    %v566 = vunpack.c.l.b16 %v98
    %v567 = vunpack.c.h.b16 %v98
    %v568 = vunpack.c.l.b16 %v99
    %v569 = vunpack.c.h.b16 %v99
    %v570 = vunpack.c.l.b16 %v100
    %v571 = vunpack.c.h.b16 %v100
    %v572 = vunpack.c.l.b16 %v101
    %v573 = vunpack.c.h.b16 %v101
    %v574 = vunpack.c.l.b16 %v102
    %v575 = vunpack.c.h.b16 %v102
    %v576 = vunpack.c.l.b16 %v103
    %v577 = vunpack.c.h.b16 %v103
    %v578 = vunpack.c.l.b16 %v104
    %v579 = vunpack.c.h.b16 %v104
    %v580 = vunpack.c.l.b16 %v105
    %v581 = vunpack.c.h.b16 %v105
    %v582 = vunpack.c.l.b16 %v106
    %v583 = vunpack.c.h.b16 %v106
    %v584 = vunpack.c.l.b16 %v107
    %v585 = vunpack.c.h.b16 %v107
    %v586 = vunpack.c.l.b16 %v108
    %v587 = vunpack.c.h.b16 %v108
    %v588 = vunpack.c.l.b16 %v109
    %v589 = vunpack.c.h.b16 %v109
    %v590 = vunpack.c.l.b16 %v110
    %v591 = vunpack.c.h.b16 %v110
    %v592 = vunpack.c.l.b16 %v111
    %v593 = vunpack.c.h.b16 %v111
    %v594 = vunpack.c.l.b16 %v112
    %v595 = vunpack.c.h.b16 %v112
    %v596 = vunpack.c.l.b16 %v113
    %v597 = vunpack.c.h.b16 %v113
    %v598 = vunpack.c.l.b16 %v114
    %v599 = vunpack.c.h.b16 %v114
    %v600 = vunpack.c.l.b16 %v115
    %v601 = vunpack.c.h.b16 %v115
    %v602 = vunpack.c.l.b16 %v116
    %v603 = vunpack.c.h.b16 %v116
    %v604 = vunpack.c.l.b16 %v117
    %v605 = vunpack.c.h.b16 %v117
    %v606 = vunpack.c.l.b16 %v118
    %v607 = vunpack.c.h.b16 %v118
    %v608 = vunpack.c.l.b16 %v119
    %v609 = vunpack.c.h.b16 %v119
    %v610 = vunpack.c.l.b16 %v120
    %v611 = vunpack.c.h.b16 %v120
    %v612 = vunpack.c.l.b16 %v121
    %v613 = vunpack.c.h.b16 %v121
    %v614 = vunpack.c.l.b16 %v122
    %v615 = vunpack.c.h.b16 %v122
    %v616 = vunpack.c.l.b16 %v123
    %v617 = vunpack.c.h.b16 %v123
    %v618 = vunpack.c.l.b16 %v124
    %v619 = vunpack.c.h.b16 %v124
    %v620 = vunpack.c.l.b16 %v125
    %v621 = vunpack.c.h.b16 %v125
    %v622 = vunpack.c.l.b16 %v126
    %v623 = vunpack.c.h.b16 %v126
    %v624 = vunpack.c.l.b16 %v127
    %v625 = vunpack.c.h.b16 %v127
    %v626 = vunpack.c.l.b16 %v128
    %v627 = vunpack.c.h.b16 %v128
    %v628 = vunpack.c.l.b16 %v129
    %v629 = vunpack.c.h.b16 %v129
    %v630 = vunpack.c.l.b16 %v130
    %v631 = vunpack.c.h.b16 %v130
    %v632 = vunpack.c.l.b16 %v131
    %v633 = vunpack.c.h.b16 %v131
    %v634 = vunpack.c.l.b16 %v132
    %v635 = vunpack.c.h.b16 %v132
    %v636 = vunpack.c.l.b16 %v133
    %v637 = vunpack.c.h.b16 %v133
    %v638 = vunpack.c.l.b16 %v134
    %v639 = vunpack.c.h.b16 %v134
    %v640 = vunpack.c.l.b16 %v135
    %v641 = vunpack.c.h.b16 %v135
    %v642 = vunpack.c.l.b16 %v136
    %v643 = vunpack.c.h.b16 %v136
    %v644 = vunpack.c.l.b16 %v137
    %v645 = vunpack.c.h.b16 %v137
    %v646 = vunpack.c.l.b16 %v138
    %v647 = vunpack.c.h.b16 %v138
    %v648 = vunpack.c.l.b16 %v139
    %v649 = vunpack.c.h.b16 %v139
    %v650 = vunpack.c.l.b16 %v140
    %v651 = vunpack.c.h.b16 %v140
    %v652 = vunpack.c.l.b16 %v141
    %v653 = vunpack.c.h.b16 %v141
    %v654 = vunpack.c.l.b16 %v142
    %v655 = vunpack.c.h.b16 %v142
    %v656 = vunpack.c.l.b16 %v143
    %v657 = vunpack.c.h.b16 %v143
    %v658 = vunpack.c.l.b16 %v144
    %v659 = vunpack.c.h.b16 %v144
    %v660 = vunpack.c.l.b16 %v145
    %v661 = vunpack.c.h.b16 %v145
    %v662 = vunpack.c.l.b16 %v146
    %v663 = vunpack.c.h.b16 %v146
    %v664 = vunpack.c.l.b16 %v147
    %v665 = vunpack.c.h.b16 %v147
    %v666 = vunpack.c.l.b16 %v148
    %v667 = vunpack.c.h.b16 %v148
    %v668 = vunpack.c.l.b16 %v149
    %v669 = vunpack.c.h.b16 %v149
    %v670 = vunpack.c.l.b16 %v150
    %v671 = vunpack.c.h.b16 %v150
    %v672 = vunpack.c.l.b16 %v151
    %v673 = vunpack.c.h.b16 %v151
    %v674 = vunpack.c.l.b16 %v152
    %v675 = vunpack.c.h.b16 %v152
    %v676 = vunpack.c.l.b16 %v153
    %v677 = vunpack.c.h.b16 %v153
    %v678 = vunpack.c.l.b16 %v154
    %v679 = vunpack.c.h.b16 %v154
    %v680 = vunpack.c.l.b16 %v155
    %v681 = vunpack.c.h.b16 %v155
    %v682 = vunpack.c.l.b16 %v156
    %v683 = vunpack.c.h.b16 %v156
    %v684 = vunpack.c.l.b16 %v157
    %v685 = vunpack.c.h.b16 %v157
    %v686 = vunpack.c.l.b16 %v158
    %v687 = vunpack.c.h.b16 %v158
    %v688 = vunpack.c.l.b16 %v159
    %v689 = vunpack.c.h.b16 %v159
    %v690 = vunpack.c.l.b16 %v160
    %v691 = vunpack.c.h.b16 %v160
    %v692 = vunpack.c.l.b16 %v161
    %v693 = vunpack.c.h.b16 %v161
    %v694 = vunpack.c.l.b16 %v162
    %v695 = vunpack.c.h.b16 %v162
    %v696 = vunpack.c.l.b16 %v163
    %v697 = vunpack.c.h.b16 %v163
    %v698 = vunpack.c.l.b16 %v164
    %v699 = vunpack.c.h.b16 %v164
    %v700 = vunpack.c.l.b16 %v165
    %v701 = vunpack.c.h.b16 %v165
    %v702 = vunpack.c.l.b16 %v166
    %v703 = vunpack.c.h.b16 %v166
    %v704 = vunpack.c.l.b16 %v167
    %v705 = vunpack.c.h.b16 %v167
    %v706 = vunpack.c.l.b16 %v168
    %v707 = vunpack.c.h.b16 %v168
    %v708 = vunpack.c.l.b16 %v169
    %v709 = vunpack.c.h.b16 %v169
    %v710 = vunpack.c.l.b16 %v170
    %v711 = vunpack.c.h.b16 %v170
    %v712 = vunpack.c.l.b16 %v171
    %v713 = vunpack.c.h.b16 %v171
    %v714 = vunpack.c.l.b16 %v172
    %v715 = vunpack.c.h.b16 %v172
    %v716 = vunpack.c.l.b16 %v173
    %v717 = vunpack.c.h.b16 %v173
    %v718 = vunpack.c.l.b16 %v174
    %v719 = vunpack.c.h.b16 %v174
    %v720 = vunpack.c.l.b16 %v175
    %v721 = vunpack.c.h.b16 %v175
    %v722 = vunpack.c.l.b16 %v176
    %v723 = vunpack.c.h.b16 %v176
    %v724 = vunpack.c.l.b16 %v177
    %v725 = vunpack.c.h.b16 %v177
    %v726 = vunpack.c.l.b16 %v178
    %v727 = vunpack.c.h.b16 %v178
    %v728 = vunpack.c.l.b16 %v179
    %v729 = vunpack.c.h.b16 %v179
    %v730 = vunpack.c.l.b16 %v180
    %v731 = vunpack.c.h.b16 %v180
    %v732 = vunpack.c.l.b16 %v181
    %v733 = vunpack.c.h.b16 %v181
    %v734 = vunpack.c.l.b16 %v182
    %v735 = vunpack.c.h.b16 %v182
    %v736 = vunpack.c.l.b16 %v183
    %v737 = vunpack.c.h.b16 %v183
    %v738 = vunpack.c.l.b16 %v184
    %v739 = vunpack.c.h.b16 %v184
    %v740 = vunpack.c.l.b16 %v185
    %v741 = vunpack.c.h.b16 %v185
    %v742 = vunpack.c.l.b16 %v186
    %v743 = vunpack.c.h.b16 %v186
    %v744 = vunpack.c.l.b16 %v187
    %v745 = vunpack.c.h.b16 %v187
    %v746 = vunpack.c.l.b16 %v188
    %v747 = vunpack.c.h.b16 %v188
    %v748 = vunpack.c.l.b16 %v189
    %v749 = vunpack.c.h.b16 %v189
    %v750 = vunpack.c.l.b16 %v190
    %v751 = vunpack.c.h.b16 %v190
    %v752 = vunpack.c.l.b16 %v191
    %v753 = vunpack.c.h.b16 %v191
    %v754 = vunpack.c.l.b16 %v192
    %v755 = vunpack.c.h.b16 %v192
    %v756 = vunpack.c.l.b16 %v193
    %v757 = vunpack.c.h.b16 %v193
    %v758 = vunpack.c.l.b16 %v194
    %v759 = vunpack.c.h.b16 %v194
    %v760 = vunpack.c.l.b16 %v195
    %v761 = vunpack.c.h.b16 %v195
    %v762 = vunpack.c.l.b16 %v196
    %v763 = vunpack.c.h.b16 %v196
    %v764 = vunpack.c.l.b16 %v197
    %v765 = vunpack.c.h.b16 %v197
    %v766 = vunpack.c.l.b16 %v198
    %v767 = vunpack.c.h.b16 %v198
    %v768 = vunpack.c.l.b16 %v199
    %v769 = vunpack.c.h.b16 %v199
    %v770 = vunpack.c.l.b16 %v200
    %v771 = vunpack.c.h.b16 %v200
    %v772 = vunpack.c.l.b16 %v201
    %v773 = vunpack.c.h.b16 %v201
    %v774 = vunpack.c.l.b16 %v202
    %v775 = vunpack.c.h.b16 %v202
    %v776 = vunpack.c.l.b16 %v203
    %v777 = vunpack.c.h.b16 %v203
    %v778 = vunpack.c.l.b16 %v204
    %v779 = vunpack.c.h.b16 %v204
    %v780 = vunpack.c.l.b16 %v205
    %v781 = vunpack.c.h.b16 %v205
    %v782 = vunpack.c.l.b16 %v206
    %v783 = vunpack.c.h.b16 %v206
    %v784 = vunpack.c.l.b16 %v207
    %v785 = vunpack.c.h.b16 %v207
    %v786 = vunpack.c.l.b16 %v208
    %v787 = vunpack.c.h.b16 %v208
    %v788 = vunpack.c.l.b16 %v209
    %v789 = vunpack.c.h.b16 %v209
    %v790 = vunpack.c.l.b16 %v210
    %v791 = vunpack.c.h.b16 %v210
    %v792 = vunpack.c.l.b16 %v211
    %v793 = vunpack.c.h.b16 %v211
    %v794 = vunpack.c.l.b16 %v212
    %v795 = vunpack.c.h.b16 %v212
    %v796 = vunpack.c.l.b16 %v213
    %v797 = vunpack.c.h.b16 %v213
    %v798 = vunpack.c.l.b16 %v214
    %v799 = vunpack.c.h.b16 %v214
    %v800 = vunpack.c.l.b16 %v215
    %v801 = vunpack.c.h.b16 %v215
    %v802 = vunpack.c.l.b16 %v216
    %v803 = vunpack.c.h.b16 %v216
    %v804 = vunpack.c.l.b16 %v217
    %v805 = vunpack.c.h.b16 %v217
    %v806 = vunpack.c.l.b16 %v218
    %v807 = vunpack.c.h.b16 %v218
    %v808 = vunpack.c.l.b16 %v219
    %v809 = vunpack.c.h.b16 %v219
    %v810 = vunpack.c.l.b16 %v220
    %v811 = vunpack.c.h.b16 %v220
    %v812 = vunpack.c.l.b16 %v221
    %v813 = vunpack.c.h.b16 %v221
    %v814 = vunpack.c.l.b16 %v222
    %v815 = vunpack.c.h.b16 %v222
    %v816 = vunpack.c.l.b16 %v223
    %v817 = vunpack.c.h.b16 %v223
    %v818 = vunpack.c.l.b16 %v224
    %v819 = vunpack.c.h.b16 %v224
    %v820 = vunpack.c.l.b16 %v225
    %v821 = vunpack.c.h.b16 %v225
    %v822 = vunpack.c.l.b16 %v226
    %v823 = vunpack.c.h.b16 %v226
    %v824 = vunpack.c.l.b16 %v227
    %v825 = vunpack.c.h.b16 %v227
    %v826 = vunpack.c.l.b16 %v228
    %v827 = vunpack.c.h.b16 %v228
    %v828 = vunpack.c.l.b16 %v229
    %v829 = vunpack.c.h.b16 %v229
    %v830 = vunpack.c.l.b16 %v230
    %v831 = vunpack.c.h.b16 %v230
    %v832 = vunpack.c.l.b16 %v231
    %v833 = vunpack.c.h.b16 %v231
    %v834 = vunpack.c.l.b16 %v232
    %v835 = vunpack.c.h.b16 %v232
    %v836 = vunpack.c.l.b16 %v233
    %v837 = vunpack.c.h.b16 %v233
    %v838 = vunpack.c.l.b16 %v234
    %v839 = vunpack.c.h.b16 %v234
    %v840 = vunpack.c.l.b16 %v235
    %v841 = vunpack.c.h.b16 %v235
    %v842 = vunpack.c.l.b16 %v236
    %v843 = vunpack.c.h.b16 %v236
    %v844 = vunpack.c.l.b16 %v237
    %v845 = vunpack.c.h.b16 %v237
    %v846 = vunpack.c.l.b16 %v238
    %v847 = vunpack.c.h.b16 %v238
    %v848 = vunpack.c.l.b16 %v239
    %v849 = vunpack.c.h.b16 %v239
    %v850 = vunpack.c.l.b16 %v240
    %v851 = vunpack.c.h.b16 %v240
    %v852 = vunpack.c.l.b16 %v241
    %v853 = vunpack.c.h.b16 %v241
    %v854 = vunpack.c.l.b16 %v242
    %v855 = vunpack.c.h.b16 %v242
    %v856 = vunpack.c.l.b16 %v243
    %v857 = vunpack.c.h.b16 %v243
    %v858 = vunpack.c.l.b16 %v244
    %v859 = vunpack.c.h.b16 %v244
    %v860 = vunpack.c.l.b16 %v245
    %v861 = vunpack.c.h.b16 %v245
    %v862 = vunpack.c.l.b16 %v246
    %v863 = vunpack.c.h.b16 %v246
    %v864 = vunpack.c.l.b16 %v247
    %v865 = vunpack.c.h.b16 %v247
    %v866 = vunpack.c.l.b16 %v248
    %v867 = vunpack.c.h.b16 %v248
    %v868 = vunpack.c.l.b16 %v249
    %v869 = vunpack.c.h.b16 %v249
    %v870 = vunpack.c.l.b16 %v250
    %v871 = vunpack.c.h.b16 %v250
    %v872 = vunpack.c.l.b16 %v251
    %v873 = vunpack.c.h.b16 %v251
    %v874 = vunpack.c.l.b16 %v252
    %v875 = vunpack.c.h.b16 %v252
    %v876 = vunpack.c.l.b16 %v253
    %v877 = vunpack.c.h.b16 %v253
    %v878 = vunpack.c.l.b16 %v254
    %v879 = vunpack.c.h.b16 %v254
    %v880 = vunpack.c.l.b16 %v255
    %v881 = vunpack.c.h.b16 %v255
    %v882 = vunpack.c.l.b16 %v256
    %v883 = vunpack.c.h.b16 %v256
    %v884 = vunpack.c.l.b16 %v257
    %v885 = vunpack.c.h.b16 %v257
    %v886 = vunpack.c.l.b16 %v258
    %v887 = vunpack.c.h.b16 %v258
    %v888 = vunpack.c.l.b16 %v259
    %v889 = vunpack.c.h.b16 %v259
    %v890 = vunpack.c.l.b16 %v260
    %v891 = vunpack.c.h.b16 %v260
    %v892 = vunpack.c.l.b16 %v261
    %v893 = vunpack.c.h.b16 %v261
    %v894 = vunpack.c.l.b16 %v262
    %v895 = vunpack.c.h.b16 %v262
    %v896 = vunpack.c.l.b16 %v263
    %v897 = vunpack.c.h.b16 %v263
    %v898 = vunpack.c.l.b16 %v264
    %v899 = vunpack.c.h.b16 %v264
    %v900 = vunpack.c.l.b16 %v265
    %v901 = vunpack.c.h.b16 %v265
    %v902 = vunpack.c.l.b16 %v266
    %v903 = vunpack.c.h.b16 %v266
    %v904 = vunpack.c.l.b16 %v267
    %v905 = vunpack.c.h.b16 %v267
    %v906 = vunpack.c.l.b16 %v268
    %v907 = vunpack.c.h.b16 %v268
    %v908 = vunpack.c.l.b16 %v269
    %v909 = vunpack.c.h.b16 %v269
    %v910 = vunpack.c.l.b16 %v270
    %v911 = vunpack.c.h.b16 %v270
    %v912 = vunpack.c.l.b16 %v271
    %v913 = vunpack.c.h.b16 %v271
    %v914 = vunpack.c.l.b16 %v272
    %v915 = vunpack.c.h.b16 %v272
    %v916 = vunpack.c.l.b16 %v273
    %v917 = vunpack.c.h.b16 %v273
    %v918 = vunpack.c.l.b16 %v274
    %v919 = vunpack.c.h.b16 %v274
    %v920 = vunpack.c.l.b16 %v275
    %v921 = vunpack.c.h.b16 %v275
    %v922 = vunpack.c.l.b16 %v276
    %v923 = vunpack.c.h.b16 %v276
    %v924 = vunpack.c.l.b16 %v277
    %v925 = vunpack.c.h.b16 %v277
    %v926 = vunpack.c.l.b16 %v278
    %v927 = vunpack.c.h.b16 %v278
    %v928 = vunpack.c.l.b16 %v279
    %v929 = vunpack.c.h.b16 %v279
    %v930 = vunpack.c.l.b16 %v280
    %v931 = vunpack.c.h.b16 %v280
    %v932 = vunpack.c.l.b16 %v281
    %v933 = vunpack.c.h.b16 %v281
    %v934 = vunpack.c.l.b16 %v282
    %v935 = vunpack.c.h.b16 %v282
    %v936 = vunpack.c.l.b16 %v283
    %v937 = vunpack.c.h.b16 %v283
    %v938 = vunpack.c.l.b16 %v284
    %v939 = vunpack.c.h.b16 %v284
    %v940 = vunpack.c.l.b16 %v285
    %v941 = vunpack.c.h.b16 %v285
    %v942 = vunpack.c.l.b16 %v286
    %v943 = vunpack.c.h.b16 %v286
    %v944 = vunpack.c.l.b16 %v287
    %v945 = vunpack.c.h.b16 %v287
    %v946 = vunpack.c.l.b16 %v288
    %v947 = vunpack.c.h.b16 %v288
    %v948 = vunpack.c.l.b16 %v289
    %v949 = vunpack.c.h.b16 %v289
    %v950 = vunpack.c.l.b16 %v290
    %v951 = vunpack.c.h.b16 %v290
    %v952 = vunpack.c.l.b16 %v291
    %v953 = vunpack.c.h.b16 %v291
    %v954 = vunpack.c.l.b16 %v292
    %v955 = vunpack.c.h.b16 %v292
    %v956 = vunpack.c.l.b16 %v293
    %v957 = vunpack.c.h.b16 %v293
    %v958 = vunpack.c.l.b16 %v294
    %v959 = vunpack.c.h.b16 %v294
    %v960 = vunpack.c.l.b16 %v295
    %v961 = vunpack.c.h.b16 %v295
    %v962 = vunpack.c.l.b16 %v296
    %v963 = vunpack.c.h.b16 %v296
    %v964 = vunpack.c.l.b16 %v297
    %v965 = vunpack.c.h.b16 %v297
    %v966 = vunpack.c.l.b16 %v298
    %v967 = vunpack.c.h.b16 %v298
    %v968 = vunpack.c.l.b16 %v299
    %v969 = vunpack.c.h.b16 %v299
    %v970 = vunpack.c.l.b16 %v300
    %v971 = vunpack.c.h.b16 %v300
    %v972 = vunpack.c.l.b16 %v301
    %v973 = vunpack.c.h.b16 %v301
    %v974 = vpack.c.b16 %v528, %v526
    %v975 = vpack.c.b16 %v529, %v527
    %v976 = vpack.c.b16 %v532, %v530
    %v977 = vpack.c.b16 %v533, %v531
    %v978 = vpack.c.b16 %v536, %v534
    %v979 = vpack.c.b16 %v537, %v535
    %v980 = vpack.c.b16 %v540, %v538
    %v981 = vpack.c.b16 %v541, %v539
    %v982 = vpack.c.b16 %v544, %v542
    %v983 = vpack.c.b16 %v545, %v543
    %v984 = vpack.c.b16 %v548, %v546
    %v985 = vpack.c.b16 %v549, %v547
    %v986 = vpack.c.b16 %v552, %v550
    %v987 = vpack.c.b16 %v553, %v551
    %v988 = vpack.c.b16 %v556, %v554
    %v989 = vpack.c.b16 %v557, %v555
    %v990 = vpack.c.b16 %v560, %v558
    %v991 = vpack.c.b16 %v561, %v559
    %v992 = vpack.c.b16 %v564, %v562
    %v993 = vpack.c.b16 %v565, %v563
    %v994 = vpack.c.b16 %v568, %v566
    %v995 = vpack.c.b16 %v569, %v567
    %v996 = vpack.c.b16 %v572, %v570
    %v997 = vpack.c.b16 %v573, %v571
    %v998 = vpack.c.b16 %v576, %v574
    %v999 = vpack.c.b16 %v577, %v575
    %v1000 = vpack.c.b16 %v580, %v578
    %v1001 = vpack.c.b16 %v581, %v579
    %v1002 = vpack.c.b16 %v584, %v582
    %v1003 = vpack.c.b16 %v585, %v583
    %v1004 = vpack.c.b16 %v588, %v586
    %v1005 = vpack.c.b16 %v589, %v587
    %v1006 = vpack.c.b16 %v592, %v590
    %v1007 = vpack.c.b16 %v593, %v591
    %v1008 = vpack.c.b16 %v596, %v594
    %v1009 = vpack.c.b16 %v597, %v595
    %v1010 = vpack.c.b16 %v600, %v598
    %v1011 = vpack.c.b16 %v601, %v599
    %v1012 = vpack.c.b16 %v604, %v602
    %v1013 = vpack.c.b16 %v605, %v603
    %v1014 = vpack.c.b16 %v608, %v606
    %v1015 = vpack.c.b16 %v609, %v607
    %v1016 = vpack.c.b16 %v612, %v610
    %v1017 = vpack.c.b16 %v613, %v611
    %v1018 = vpack.c.b16 %v616, %v614
    %v1019 = vpack.c.b16 %v617, %v615
    %v1020 = vpack.c.b16 %v620, %v618
    %v1021 = vpack.c.b16 %v621, %v619
    %v1022 = vpack.c.b16 %v624, %v622
    %v1023 = vpack.c.b16 %v625, %v623
    %v1024 = vpack.c.b16 %v628, %v626
    %v1025 = vpack.c.b16 %v629, %v627
    %v1026 = vpack.c.b16 %v632, %v630
    %v1027 = vpack.c.b16 %v633, %v631
    %v1028 = vpack.c.b16 %v636, %v634
    %v1029 = vpack.c.b16 %v637, %v635
    %v1030 = vpack.c.b16 %v640, %v638
    %v1031 = vpack.c.b16 %v641, %v639
    %v1032 = vpack.c.b16 %v644, %v642
    %v1033 = vpack.c.b16 %v645, %v643
    %v1034 = vpack.c.b16 %v648, %v646
    %v1035 = vpack.c.b16 %v649, %v647
    %v1036 = vpack.c.b16 %v652, %v650
    %v1037 = vpack.c.b16 %v653, %v651
    %v1038 = vpack.c.b16 %v656, %v654
    %v1039 = vpack.c.b16 %v657, %v655
    %v1040 = vpack.c.b16 %v660, %v658
    %v1041 = vpack.c.b16 %v661, %v659
    %v1042 = vpack.c.b16 %v664, %v662
    %v1043 = vpack.c.b16 %v665, %v663
    %v1044 = vpack.c.b16 %v668, %v666
    %v1045 = vpack.c.b16 %v669, %v667
    %v1046 = vpack.c.b16 %v672, %v670
    %v1047 = vpack.c.b16 %v673, %v671
    %v1048 = vpack.c.b16 %v676, %v674
    %v1049 = vpack.c.b16 %v677, %v675
    %v1050 = vpack.c.b16 %v680, %v678
    %v1051 = vpack.c.b16 %v681, %v679
    %v1052 = vpack.c.b16 %v684, %v682
    %v1053 = vpack.c.b16 %v685, %v683
    %v1054 = vpack.c.b16 %v688, %v686
    %v1055 = vpack.c.b16 %v689, %v687
    %v1056 = vpack.c.b16 %v692, %v690
    %v1057 = vpack.c.b16 %v693, %v691
    %v1058 = vpack.c.b16 %v696, %v694
    %v1059 = vpack.c.b16 %v697, %v695
    %v1060 = vpack.c.b16 %v700, %v698
    %v1061 = vpack.c.b16 %v701, %v699
    %v1062 = vpack.c.b16 %v704, %v702
    %v1063 = vpack.c.b16 %v705, %v703
    %v1064 = vpack.c.b16 %v708, %v706
    %v1065 = vpack.c.b16 %v709, %v707
    %v1066 = vpack.c.b16 %v712, %v710
    %v1067 = vpack.c.b16 %v713, %v711
    %v1068 = vpack.c.b16 %v716, %v714
    %v1069 = vpack.c.b16 %v717, %v715
    %v1070 = vpack.c.b16 %v720, %v718
    %v1071 = vpack.c.b16 %v721, %v719
    %v1072 = vpack.c.b16 %v724, %v722
    %v1073 = vpack.c.b16 %v725, %v723
    %v1074 = vpack.c.b16 %v728, %v726
    %v1075 = vpack.c.b16 %v729, %v727
    %v1076 = vpack.c.b16 %v732, %v730
    %v1077 = vpack.c.b16 %v733, %v731
    %v1078 = vpack.c.b16 %v736, %v734
    %v1079 = vpack.c.b16 %v737, %v735
    %v1080 = vpack.c.b16 %v740, %v738
    %v1081 = vpack.c.b16 %v741, %v739
    %v1082 = vpack.c.b16 %v744, %v742
    %v1083 = vpack.c.b16 %v745, %v743
    %v1084 = vpack.c.b16 %v748, %v746
    %v1085 = vpack.c.b16 %v749, %v747
    %v1086 = vpack.c.b16 %v752, %v750
    %v1087 = vpack.c.b16 %v753, %v751
    %v1088 = vpack.c.b16 %v756, %v754
    %v1089 = vpack.c.b16 %v757, %v755
    %v1090 = vpack.c.b16 %v760, %v758
    %v1091 = vpack.c.b16 %v761, %v759
    %v1092 = vpack.c.b16 %v764, %v762
    %v1093 = vpack.c.b16 %v765, %v763
    %v1094 = vpack.c.b16 %v768, %v766
    %v1095 = vpack.c.b16 %v769, %v767
    %v1096 = vpack.c.b16 %v772, %v770
    %v1097 = vpack.c.b16 %v773, %v771
    %v1098 = vpack.c.b16 %v776, %v774
    %v1099 = vpack.c.b16 %v777, %v775
    %v1100 = vpack.c.b16 %v780, %v778
    %v1101 = vpack.c.b16 %v781, %v779
    %v1102 = vpack.c.b16 %v784, %v782
    %v1103 = vpack.c.b16 %v785, %v783
    %v1104 = vpack.c.b16 %v788, %v786
    %v1105 = vpack.c.b16 %v789, %v787
    %v1106 = vpack.c.b16 %v792, %v790
    %v1107 = vpack.c.b16 %v793, %v791
    %v1108 = vpack.c.b16 %v796, %v794
    %v1109 = vpack.c.b16 %v797, %v795
    %v1110 = vpack.c.b16 %v800, %v798
    %v1111 = vpack.c.b16 %v801, %v799
    %v1112 = vpack.c.b16 %v804, %v802
    %v1113 = vpack.c.b16 %v805, %v803
    %v1114 = vpack.c.b16 %v808, %v806
    %v1115 = vpack.c.b16 %v809, %v807
    %v1116 = vpack.c.b16 %v812, %v810
    %v1117 = vpack.c.b16 %v813, %v811
    %v1118 = vpack.c.b16 %v816, %v814
    %v1119 = vpack.c.b16 %v817, %v815
    %v1120 = vpack.c.b16 %v820, %v818
    %v1121 = vpack.c.b16 %v821, %v819
    %v1122 = vpack.c.b16 %v824, %v822
    %v1123 = vpack.c.b16 %v825, %v823
    %v1124 = vpack.c.b16 %v828, %v826
    %v1125 = vpack.c.b16 %v829, %v827
    %v1126 = vpack.c.b16 %v832, %v830
    %v1127 = vpack.c.b16 %v833, %v831
    %v1128 = vpack.c.b16 %v836, %v834
    %v1129 = vpack.c.b16 %v837, %v835
    %v1130 = vpack.c.b16 %v840, %v838
    %v1131 = vpack.c.b16 %v841, %v839
    %v1132 = vpack.c.b16 %v844, %v842
    %v1133 = vpack.c.b16 %v845, %v843
    %v1134 = vpack.c.b16 %v848, %v846
    %v1135 = vpack.c.b16 %v849, %v847
    %v1136 = vpack.c.b16 %v852, %v850
    %v1137 = vpack.c.b16 %v853, %v851
    %v1138 = vpack.c.b16 %v856, %v854
    %v1139 = vpack.c.b16 %v857, %v855
    %v1140 = vpack.c.b16 %v860, %v858
    %v1141 = vpack.c.b16 %v861, %v859
    %v1142 = vpack.c.b16 %v864, %v862
    %v1143 = vpack.c.b16 %v865, %v863
    %v1144 = vpack.c.b16 %v868, %v866
    %v1145 = vpack.c.b16 %v869, %v867
    %v1146 = vpack.c.b16 %v872, %v870
    %v1147 = vpack.c.b16 %v873, %v871
    %v1148 = vpack.c.b16 %v876, %v874
    %v1149 = vpack.c.b16 %v877, %v875
    %v1150 = vpack.c.b16 %v880, %v878
    %v1151 = vpack.c.b16 %v881, %v879
    %v1152 = vpack.c.b16 %v884, %v882
    %v1153 = vpack.c.b16 %v885, %v883
    %v1154 = vpack.c.b16 %v888, %v886
    %v1155 = vpack.c.b16 %v889, %v887
    %v1156 = vpack.c.b16 %v892, %v890
    %v1157 = vpack.c.b16 %v893, %v891
    %v1158 = vpack.c.b16 %v896, %v894
    %v1159 = vpack.c.b16 %v897, %v895
    %v1160 = vpack.c.b16 %v900, %v898
    %v1161 = vpack.c.b16 %v901, %v899
    %v1162 = vpack.c.b16 %v904, %v902
    %v1163 = vpack.c.b16 %v905, %v903
    %v1164 = vpack.c.b16 %v908, %v906
    %v1165 = vpack.c.b16 %v909, %v907
    %v1166 = vpack.c.b16 %v912, %v910
    %v1167 = vpack.c.b16 %v913, %v911
    %v1168 = vpack.c.b16 %v916, %v914
    %v1169 = vpack.c.b16 %v917, %v915
    %v1170 = vpack.c.b16 %v920, %v918
    %v1171 = vpack.c.b16 %v921, %v919
    %v1172 = vpack.c.b16 %v924, %v922
    %v1173 = vpack.c.b16 %v925, %v923
    %v1174 = vpack.c.b16 %v928, %v926
    %v1175 = vpack.c.b16 %v929, %v927
    %v1176 = vpack.c.b16 %v932, %v930
    %v1177 = vpack.c.b16 %v933, %v931
    %v1178 = vpack.c.b16 %v936, %v934
    %v1179 = vpack.c.b16 %v937, %v935
    %v1180 = vpack.c.b16 %v940, %v938
    %v1181 = vpack.c.b16 %v941, %v939
    %v1182 = vpack.c.b16 %v944, %v942
    %v1183 = vpack.c.b16 %v945, %v943
    %v1184 = vpack.c.b16 %v948, %v946
    %v1185 = vpack.c.b16 %v949, %v947
    %v1186 = vpack.c.b16 %v952, %v950
    %v1187 = vpack.c.b16 %v953, %v951
    %v1188 = vpack.c.b16 %v956, %v954
    %v1189 = vpack.c.b16 %v957, %v955
    %v1190 = vpack.c.b16 %v960, %v958
    %v1191 = vpack.c.b16 %v961, %v959
    %v1192 = vpack.c.b16 %v964, %v962
    %v1193 = vpack.c.b16 %v965, %v963
    %v1194 = vpack.c.b16 %v968, %v966
    %v1195 = vpack.c.b16 %v969, %v967
    %v1196 = vpack.c.b16 %v972, %v970
    %v1197 = vpack.c.b16 %v973, %v971
    %1422 = vmatprep.subr.bf16.mxu0 %v989
    %1423 = vmatpush1.bf16.msra.mxu0 %v988
    %1424 = vmatprep.subr.bf16.mxu0 %v987
    %1425 = vmatpush1.bf16.msra.mxu0 %v986
    %1426 = vmatprep.subr.bf16.mxu0 %v985
    %1427 = vmatpush1.bf16.msra.mxu0 %v984
    %1428 = vmatprep.subr.bf16.mxu0 %v983
    %1429 = vmatpush1.bf16.msra.mxu0 %v982
    %1430 = vmatprep.subr.bf16.mxu0 %v981
    %1431 = vmatpush1.bf16.msra.mxu0 %v980
    %1432 = vmatprep.subr.bf16.mxu0 %v979
    %1433 = vmatpush1.bf16.msra.mxu0 %v978
    %1434 = vmatprep.subr.bf16.mxu0 %v977
    %1435 = vmatpush1.bf16.msra.mxu0 %v976
    %1436 = vmatprep.subr.bf16.mxu0 %v975
    %1437 = vmatpush1.bf16.msra.mxu0 %v974
    %1438 = vmatprep.subr.bf16.mxu0 %v1005
    %1439 = vmatpush2.bf16.msra.mxu0 %v1004
    %1440 = vmatprep.subr.bf16.mxu0 %v1003
    %1441 = vmatpush2.bf16.msra.mxu0 %v1002
    %1442 = vmatprep.subr.bf16.mxu0 %v1001
    %1443 = vmatpush2.bf16.msra.mxu0 %v1000
    %1444 = vmatprep.subr.bf16.mxu0 %v999
    %1445 = vmatpush2.bf16.msra.mxu0 %v998
    %1446 = vmatprep.subr.bf16.mxu0 %v997
    %1447 = vmatpush2.bf16.msra.mxu0 %v996
    %1448 = vmatprep.subr.bf16.mxu0 %v995
    %1449 = vmatpush2.bf16.msra.mxu0 %v994
    %1450 = vmatprep.subr.bf16.mxu0 %v993
    %1451 = vmatpush2.bf16.msra.mxu0 %v992
    %1452 = vmatprep.subr.bf16.mxu0 %v991
    %1453 = vmatpush2.bf16.msra.mxu0 %v990
    %1454 = vmatprep.mubr.bf16.mxu0 %v65
    %1455 = vmatmul.mubr.bf16.gmra.mxu0 %v64
    %v1456 = vpop.f32.mrf.mxu0
    %v1457 = vadd.f32 0.0, %v1456
    %v1458 = vpop.f32.mrf.mxu0
    %v1459 = vadd.f32 0.0, %v1458
    %v1460 = vpop.f32.mrf.mxu0
    %v1461 = vpop.f32.mrf.mxu0
    %1462 = vdwg.mxu0
    %1463 = vmatprep.subr.bf16.mxu0 %v1021
    %1464 = vmatpush1.bf16.msra.mxu0 %v1020
    %1465 = vmatprep.subr.bf16.mxu0 %v1019
    %1466 = vmatpush1.bf16.msra.mxu0 %v1018
    %1467 = vmatprep.subr.bf16.mxu0 %v1017
    %1468 = vmatpush1.bf16.msra.mxu0 %v1016
    %1469 = vmatprep.subr.bf16.mxu0 %v1015
    %1470 = vmatpush1.bf16.msra.mxu0 %v1014
    %1471 = vmatprep.subr.bf16.mxu0 %v1013
    %1472 = vmatpush1.bf16.msra.mxu0 %v1012
    %1473 = vmatprep.subr.bf16.mxu0 %v1011
    %1474 = vmatpush1.bf16.msra.mxu0 %v1010
    %1475 = vmatprep.subr.bf16.mxu0 %v1009
    %1476 = vmatpush1.bf16.msra.mxu0 %v1008
    %1477 = vmatprep.subr.bf16.mxu0 %v1007
    %1478 = vmatpush1.bf16.msra.mxu0 %v1006
    %1479 = vmatprep.subr.bf16.mxu0 %v1037
    %1480 = vmatpush2.bf16.msra.mxu0 %v1036
    %1481 = vmatprep.subr.bf16.mxu0 %v1035
    %1482 = vmatpush2.bf16.msra.mxu0 %v1034
    %1483 = vmatprep.subr.bf16.mxu0 %v1033
    %1484 = vmatpush2.bf16.msra.mxu0 %v1032
    %1485 = vmatprep.subr.bf16.mxu0 %v1031
    %1486 = vmatpush2.bf16.msra.mxu0 %v1030
    %1487 = vmatprep.subr.bf16.mxu0 %v1029
    %1488 = vmatpush2.bf16.msra.mxu0 %v1028
    %1489 = vmatprep.subr.bf16.mxu0 %v1027
    %1490 = vmatpush2.bf16.msra.mxu0 %v1026
    %1491 = vmatprep.subr.bf16.mxu0 %v1025
    %1492 = vmatpush2.bf16.msra.mxu0 %v1024
    %1493 = vmatprep.subr.bf16.mxu0 %v1023
    %1494 = vmatpush2.bf16.msra.mxu0 %v1022
    %1495 = vmatprep.mubr.bf16.mxu0 %v67
    %1496 = vmatmul.mubr.bf16.gmra.mxu0 %v66
    %v1497 = vpop.f32.mrf.mxu0
    %v1498 = vadd.f32 %v1457, %v1497
    %v1499 = vpop.f32.mrf.mxu0
    %v1500 = vadd.f32 %v1459, %v1499
    %v1501 = vpop.f32.mrf.mxu0
    %v1502 = vpop.f32.mrf.mxu0
    %1503 = vdwg.mxu0
    %1504 = vmatprep.subr.bf16.mxu0 %v1053
    %1505 = vmatpush1.bf16.msra.mxu0 %v1052
    %1506 = vmatprep.subr.bf16.mxu0 %v1051
    %1507 = vmatpush1.bf16.msra.mxu0 %v1050
    %1508 = vmatprep.subr.bf16.mxu0 %v1049
    %1509 = vmatpush1.bf16.msra.mxu0 %v1048
    %1510 = vmatprep.subr.bf16.mxu0 %v1047
    %1511 = vmatpush1.bf16.msra.mxu0 %v1046
    %1512 = vmatprep.subr.bf16.mxu0 %v1045
    %1513 = vmatpush1.bf16.msra.mxu0 %v1044
    %1514 = vmatprep.subr.bf16.mxu0 %v1043
    %1515 = vmatpush1.bf16.msra.mxu0 %v1042
    %1516 = vmatprep.subr.bf16.mxu0 %v1041
    %1517 = vmatpush1.bf16.msra.mxu0 %v1040
    %1518 = vmatprep.subr.bf16.mxu0 %v1039
    %1519 = vmatpush1.bf16.msra.mxu0 %v1038
    %1520 = vmatprep.subr.bf16.mxu0 %v1069
    %1521 = vmatpush2.bf16.msra.mxu0 %v1068
    %1522 = vmatprep.subr.bf16.mxu0 %v1067
    %1523 = vmatpush2.bf16.msra.mxu0 %v1066
    %1524 = vmatprep.subr.bf16.mxu0 %v1065
    %1525 = vmatpush2.bf16.msra.mxu0 %v1064
    %1526 = vmatprep.subr.bf16.mxu0 %v1063
    %1527 = vmatpush2.bf16.msra.mxu0 %v1062
    %1528 = vmatprep.subr.bf16.mxu0 %v1061
    %1529 = vmatpush2.bf16.msra.mxu0 %v1060
    %1530 = vmatprep.subr.bf16.mxu0 %v1059
    %1531 = vmatpush2.bf16.msra.mxu0 %v1058
    %1532 = vmatprep.subr.bf16.mxu0 %v1057
    %1533 = vmatpush2.bf16.msra.mxu0 %v1056
    %1534 = vmatprep.subr.bf16.mxu0 %v1055
    %1535 = vmatpush2.bf16.msra.mxu0 %v1054
    %1536 = vmatprep.mubr.bf16.mxu0 %v69
    %1537 = vmatmul.mubr.bf16.gmra.mxu0 %v68
    %v1538 = vpop.f32.mrf.mxu0
    %v1539 = vadd.f32 %v1498, %v1538
    %v1540 = vpop.f32.mrf.mxu0
    %v1541 = vadd.f32 %v1500, %v1540
    %v1542 = vpop.f32.mrf.mxu0
    %v1543 = vpop.f32.mrf.mxu0
    %1544 = vdwg.mxu0
    %1545 = vmatprep.subr.bf16.mxu0 %v1085
    %1546 = vmatpush1.bf16.msra.mxu0 %v1084
    %1547 = vmatprep.subr.bf16.mxu0 %v1083
    %1548 = vmatpush1.bf16.msra.mxu0 %v1082
    %1549 = vmatprep.subr.bf16.mxu0 %v1081
    %1550 = vmatpush1.bf16.msra.mxu0 %v1080
    %1551 = vmatprep.subr.bf16.mxu0 %v1079
    %1552 = vmatpush1.bf16.msra.mxu0 %v1078
    %1553 = vmatprep.subr.bf16.mxu0 %v1077
    %1554 = vmatpush1.bf16.msra.mxu0 %v1076
    %1555 = vmatprep.subr.bf16.mxu0 %v1075
    %1556 = vmatpush1.bf16.msra.mxu0 %v1074
    %1557 = vmatprep.subr.bf16.mxu0 %v1073
    %1558 = vmatpush1.bf16.msra.mxu0 %v1072
    %1559 = vmatprep.subr.bf16.mxu0 %v1071
    %1560 = vmatpush1.bf16.msra.mxu0 %v1070
    %1561 = vmatprep.subr.bf16.mxu0 %v1101
    %1562 = vmatpush2.bf16.msra.mxu0 %v1100
    %1563 = vmatprep.subr.bf16.mxu0 %v1099
    %1564 = vmatpush2.bf16.msra.mxu0 %v1098
    %1565 = vmatprep.subr.bf16.mxu0 %v1097
    %1566 = vmatpush2.bf16.msra.mxu0 %v1096
    %1567 = vmatprep.subr.bf16.mxu0 %v1095
    %1568 = vmatpush2.bf16.msra.mxu0 %v1094
    %1569 = vmatprep.subr.bf16.mxu0 %v1093
    %1570 = vmatpush2.bf16.msra.mxu0 %v1092
    %1571 = vmatprep.subr.bf16.mxu0 %v1091
    %1572 = vmatpush2.bf16.msra.mxu0 %v1090
    %1573 = vmatprep.subr.bf16.mxu0 %v1089
    %1574 = vmatpush2.bf16.msra.mxu0 %v1088
    %1575 = vmatprep.subr.bf16.mxu0 %v1087
    %1576 = vmatpush2.bf16.msra.mxu0 %v1086
    %1577 = vmatprep.mubr.bf16.mxu0 %v71
    %1578 = vmatmul.mubr.bf16.gmra.mxu0 %v70
    %v1579 = vpop.f32.mrf.mxu0
    %v1580 = vadd.f32 %v1539, %v1579
    %v1581 = vpop.f32.mrf.mxu0
    %v1582 = vadd.f32 %v1541, %v1581
    %v1583 = vpop.f32.mrf.mxu0
    %v1584 = vpop.f32.mrf.mxu0
    %1585 = vdwg.mxu0
    %1586 = vmatprep.subr.bf16.mxu0 %v1117
    %1587 = vmatpush1.bf16.msra.mxu0 %v1116
    %1588 = vmatprep.subr.bf16.mxu0 %v1115
    %1589 = vmatpush1.bf16.msra.mxu0 %v1114
    %1590 = vmatprep.subr.bf16.mxu0 %v1113
    %1591 = vmatpush1.bf16.msra.mxu0 %v1112
    %1592 = vmatprep.subr.bf16.mxu0 %v1111
    %1593 = vmatpush1.bf16.msra.mxu0 %v1110
    %1594 = vmatprep.subr.bf16.mxu0 %v1109
    %1595 = vmatpush1.bf16.msra.mxu0 %v1108
    %1596 = vmatprep.subr.bf16.mxu0 %v1107
    %1597 = vmatpush1.bf16.msra.mxu0 %v1106
    %1598 = vmatprep.subr.bf16.mxu0 %v1105
    %1599 = vmatpush1.bf16.msra.mxu0 %v1104
    %1600 = vmatprep.subr.bf16.mxu0 %v1103
    %1601 = vmatpush1.bf16.msra.mxu0 %v1102
    %1602 = vmatprep.subr.bf16.mxu0 %v1133
    %1603 = vmatpush2.bf16.msra.mxu0 %v1132
    %1604 = vmatprep.subr.bf16.mxu0 %v1131
    %1605 = vmatpush2.bf16.msra.mxu0 %v1130
    %1606 = vmatprep.subr.bf16.mxu0 %v1129
    %1607 = vmatpush2.bf16.msra.mxu0 %v1128
    %1608 = vmatprep.subr.bf16.mxu0 %v1127
    %1609 = vmatpush2.bf16.msra.mxu0 %v1126
    %1610 = vmatprep.subr.bf16.mxu0 %v1125
    %1611 = vmatpush2.bf16.msra.mxu0 %v1124
    %1612 = vmatprep.subr.bf16.mxu0 %v1123
    %1613 = vmatpush2.bf16.msra.mxu0 %v1122
    %1614 = vmatprep.subr.bf16.mxu0 %v1121
    %1615 = vmatpush2.bf16.msra.mxu0 %v1120
    %1616 = vmatprep.subr.bf16.mxu0 %v1119
    %1617 = vmatpush2.bf16.msra.mxu0 %v1118
    %1618 = vmatprep.mubr.bf16.mxu0 %v73
    %1619 = vmatmul.mubr.bf16.gmra.mxu0 %v72
    %v1620 = vpop.f32.mrf.mxu0
    %v1621 = vadd.f32 %v1580, %v1620
    %v1622 = vpop.f32.mrf.mxu0
    %v1623 = vadd.f32 %v1582, %v1622
    %v1624 = vpop.f32.mrf.mxu0
    %v1625 = vpop.f32.mrf.mxu0
    %1626 = vdwg.mxu0
    %1627 = vmatprep.subr.bf16.mxu0 %v1149
    %1628 = vmatpush1.bf16.msra.mxu0 %v1148
    %1629 = vmatprep.subr.bf16.mxu0 %v1147
    %1630 = vmatpush1.bf16.msra.mxu0 %v1146
    %1631 = vmatprep.subr.bf16.mxu0 %v1145
    %1632 = vmatpush1.bf16.msra.mxu0 %v1144
    %1633 = vmatprep.subr.bf16.mxu0 %v1143
    %1634 = vmatpush1.bf16.msra.mxu0 %v1142
    %1635 = vmatprep.subr.bf16.mxu0 %v1141
    %1636 = vmatpush1.bf16.msra.mxu0 %v1140
    %1637 = vmatprep.subr.bf16.mxu0 %v1139
    %1638 = vmatpush1.bf16.msra.mxu0 %v1138
    %1639 = vmatprep.subr.bf16.mxu0 %v1137
    %1640 = vmatpush1.bf16.msra.mxu0 %v1136
    %1641 = vmatprep.subr.bf16.mxu0 %v1135
    %1642 = vmatpush1.bf16.msra.mxu0 %v1134
    %1643 = vmatprep.subr.bf16.mxu0 %v1165
    %1644 = vmatpush2.bf16.msra.mxu0 %v1164
    %1645 = vmatprep.subr.bf16.mxu0 %v1163
    %1646 = vmatpush2.bf16.msra.mxu0 %v1162
    %1647 = vmatprep.subr.bf16.mxu0 %v1161
    %1648 = vmatpush2.bf16.msra.mxu0 %v1160
    %1649 = vmatprep.subr.bf16.mxu0 %v1159
    %1650 = vmatpush2.bf16.msra.mxu0 %v1158
    %1651 = vmatprep.subr.bf16.mxu0 %v1157
    %1652 = vmatpush2.bf16.msra.mxu0 %v1156
    %1653 = vmatprep.subr.bf16.mxu0 %v1155
    %1654 = vmatpush2.bf16.msra.mxu0 %v1154
    %1655 = vmatprep.subr.bf16.mxu0 %v1153
    %1656 = vmatpush2.bf16.msra.mxu0 %v1152
    %1657 = vmatprep.subr.bf16.mxu0 %v1151
    %1658 = vmatpush2.bf16.msra.mxu0 %v1150
    %1659 = vmatprep.mubr.bf16.mxu0 %v75
    %1660 = vmatmul.mubr.bf16.gmra.mxu0 %v74
    %v1661 = vpop.f32.mrf.mxu0
    %v1662 = vadd.f32 %v1621, %v1661
    %v1663 = vpop.f32.mrf.mxu0
    %v1664 = vadd.f32 %v1623, %v1663
    %v1665 = vpop.f32.mrf.mxu0
    %v1666 = vpop.f32.mrf.mxu0
    %1667 = vdwg.mxu0
    %1668 = vmatprep.subr.bf16.mxu0 %v1181
    %1669 = vmatpush1.bf16.msra.mxu0 %v1180
    %1670 = vmatprep.subr.bf16.mxu0 %v1179
    %1671 = vmatpush1.bf16.msra.mxu0 %v1178
    %1672 = vmatprep.subr.bf16.mxu0 %v1177
    %1673 = vmatpush1.bf16.msra.mxu0 %v1176
    %1674 = vmatprep.subr.bf16.mxu0 %v1175
    %1675 = vmatpush1.bf16.msra.mxu0 %v1174
    %1676 = vmatprep.subr.bf16.mxu0 %v1173
    %1677 = vmatpush1.bf16.msra.mxu0 %v1172
    %1678 = vmatprep.subr.bf16.mxu0 %v1171
    %1679 = vmatpush1.bf16.msra.mxu0 %v1170
    %1680 = vmatprep.subr.bf16.mxu0 %v1169
    %1681 = vmatpush1.bf16.msra.mxu0 %v1168
    %1682 = vmatprep.subr.bf16.mxu0 %v1167
    %1683 = vmatpush1.bf16.msra.mxu0 %v1166
    %1684 = vmatprep.subr.bf16.mxu0 %v1197
    %1685 = vmatpush2.bf16.msra.mxu0 %v1196
    %1686 = vmatprep.subr.bf16.mxu0 %v1195
    %1687 = vmatpush2.bf16.msra.mxu0 %v1194
    %1688 = vmatprep.subr.bf16.mxu0 %v1193
    %1689 = vmatpush2.bf16.msra.mxu0 %v1192
    %1690 = vmatprep.subr.bf16.mxu0 %v1191
    %1691 = vmatpush2.bf16.msra.mxu0 %v1190
    %1692 = vmatprep.subr.bf16.mxu0 %v1189
    %1693 = vmatpush2.bf16.msra.mxu0 %v1188
    %1694 = vmatprep.subr.bf16.mxu0 %v1187
    %1695 = vmatpush2.bf16.msra.mxu0 %v1186
    %1696 = vmatprep.subr.bf16.mxu0 %v1185
    %1697 = vmatpush2.bf16.msra.mxu0 %v1184
    %1698 = vmatprep.subr.bf16.mxu0 %v1183
    %1699 = vmatpush2.bf16.msra.mxu0 %v1182
    %1700 = vmatprep.mubr.bf16.mxu0 %v77
    %1701 = vmatmul.mubr.bf16.gmra.mxu0 %v76
    %v1702 = vpop.f32.mrf.mxu0
    %v1703 = vadd.f32 %v1662, %v1702
    %v1704 = vpop.f32.mrf.mxu0
    %v1705 = vadd.f32 %v1664, %v1704
    %v1706 = vpop.f32.mrf.mxu0
    %v1707 = vpop.f32.mrf.mxu0
    %1708 = vdwg.mxu0
    %s1709 = scalar_lea.vmem [#allocation2], 1792
    %v1710 = vld [vmem:[%s1709] sm:$0xff]
    %v1711 = vld [vmem:[%s1709 + $0x8] sm:$0xff]
    %v1712 = vld [vmem:[%s1709 + $0x10] sm:$0xff]
    %v1713 = vld [vmem:[%s1709 + $0x18] sm:$0xff]
    %v1714 = vld [vmem:[%s1709 + $0x20] sm:$0xff]
    %v1715 = vld [vmem:[%s1709 + $0x28] sm:$0xff]
    %v1716 = vld [vmem:[%s1709 + $0x30] sm:$0xff]
    %v1717 = vld [vmem:[%s1709 + $0x38] sm:$0xff]
    %v1718 = vld [vmem:[%s1709 + $0x40] sm:$0xff]
    %v1719 = vld [vmem:[%s1709 + $0x48] sm:$0xff]
    %v1720 = vld [vmem:[%s1709 + $0x50] sm:$0xff]
    %v1721 = vld [vmem:[%s1709 + $0x58] sm:$0xff]
    %v1722 = vld [vmem:[%s1709 + $0x60] sm:$0xff]
    %v1723 = vld [vmem:[%s1709 + $0x68] sm:$0xff]
    %v1724 = vld [vmem:[%s1709 + $0x70] sm:$0xff]
    %v1725 = vld [vmem:[%s1709 + $0x78] sm:$0xff]
    %v1726 = vld [vmem:[%s1709 + $0x80] sm:$0xff]
    %v1727 = vld [vmem:[%s1709 + $0x88] sm:$0xff]
    %v1728 = vld [vmem:[%s1709 + $0x90] sm:$0xff]
    %v1729 = vld [vmem:[%s1709 + $0x98] sm:$0xff]
    %v1730 = vld [vmem:[%s1709 + $0xa0] sm:$0xff]
    %v1731 = vld [vmem:[%s1709 + $0xa8] sm:$0xff]
    %v1732 = vld [vmem:[%s1709 + $0xb0] sm:$0xff]
    %v1733 = vld [vmem:[%s1709 + $0xb8] sm:$0xff]
    %v1734 = vld [vmem:[%s1709 + $0xc0] sm:$0xff]
    %v1735 = vld [vmem:[%s1709 + $0xc8] sm:$0xff]
    %v1736 = vld [vmem:[%s1709 + $0xd0] sm:$0xff]
    %v1737 = vld [vmem:[%s1709 + $0xd8] sm:$0xff]
    %v1738 = vld [vmem:[%s1709 + $0xe0] sm:$0xff]
    %v1739 = vld [vmem:[%s1709 + $0xe8] sm:$0xff]
    %v1740 = vld [vmem:[%s1709 + $0xf0] sm:$0xff]
    %v1741 = vld [vmem:[%s1709 + $0xf8] sm:$0xff]
    %v1742 = vld [vmem:[%s1709 + $0x100] sm:$0xff]
    %v1743 = vld [vmem:[%s1709 + $0x108] sm:$0xff]
    %v1744 = vld [vmem:[%s1709 + $0x110] sm:$0xff]
    %v1745 = vld [vmem:[%s1709 + $0x118] sm:$0xff]
    %v1746 = vld [vmem:[%s1709 + $0x120] sm:$0xff]
    %v1747 = vld [vmem:[%s1709 + $0x128] sm:$0xff]
    %v1748 = vld [vmem:[%s1709 + $0x130] sm:$0xff]
    %v1749 = vld [vmem:[%s1709 + $0x138] sm:$0xff]
    %v1750 = vld [vmem:[%s1709 + $0x140] sm:$0xff]
    %v1751 = vld [vmem:[%s1709 + $0x148] sm:$0xff]
    %v1752 = vld [vmem:[%s1709 + $0x150] sm:$0xff]
    %v1753 = vld [vmem:[%s1709 + $0x158] sm:$0xff]
    %v1754 = vld [vmem:[%s1709 + $0x160] sm:$0xff]
    %v1755 = vld [vmem:[%s1709 + $0x168] sm:$0xff]
    %v1756 = vld [vmem:[%s1709 + $0x170] sm:$0xff]
    %v1757 = vld [vmem:[%s1709 + $0x178] sm:$0xff]
    %v1758 = vld [vmem:[%s1709 + $0x180] sm:$0xff]
    %v1759 = vld [vmem:[%s1709 + $0x188] sm:$0xff]
    %v1760 = vld [vmem:[%s1709 + $0x190] sm:$0xff]
    %v1761 = vld [vmem:[%s1709 + $0x198] sm:$0xff]
    %v1762 = vld [vmem:[%s1709 + $0x1a0] sm:$0xff]
    %v1763 = vld [vmem:[%s1709 + $0x1a8] sm:$0xff]
    %v1764 = vld [vmem:[%s1709 + $0x1b0] sm:$0xff]
    %v1765 = vld [vmem:[%s1709 + $0x1b8] sm:$0xff]
    %v1766 = vld [vmem:[%s1709 + $0x1c0] sm:$0xff]
    %v1767 = vld [vmem:[%s1709 + $0x1c8] sm:$0xff]
    %v1768 = vld [vmem:[%s1709 + $0x1d0] sm:$0xff]
    %v1769 = vld [vmem:[%s1709 + $0x1d8] sm:$0xff]
    %v1770 = vld [vmem:[%s1709 + $0x1e0] sm:$0xff]
    %v1771 = vld [vmem:[%s1709 + $0x1e8] sm:$0xff]
    %v1772 = vld [vmem:[%s1709 + $0x1f0] sm:$0xff]
    %v1773 = vld [vmem:[%s1709 + $0x1f8] sm:$0xff]
    %v1774 = vld [vmem:[%s1709 + $0x200] sm:$0xff]
    %v1775 = vld [vmem:[%s1709 + $0x208] sm:$0xff]
    %v1776 = vld [vmem:[%s1709 + $0x210] sm:$0xff]
    %v1777 = vld [vmem:[%s1709 + $0x218] sm:$0xff]
    %v1778 = vld [vmem:[%s1709 + $0x220] sm:$0xff]
    %v1779 = vld [vmem:[%s1709 + $0x228] sm:$0xff]
    %v1780 = vld [vmem:[%s1709 + $0x230] sm:$0xff]
    %v1781 = vld [vmem:[%s1709 + $0x238] sm:$0xff]
    %v1782 = vld [vmem:[%s1709 + $0x240] sm:$0xff]
    %v1783 = vld [vmem:[%s1709 + $0x248] sm:$0xff]
    %v1784 = vld [vmem:[%s1709 + $0x250] sm:$0xff]
    %v1785 = vld [vmem:[%s1709 + $0x258] sm:$0xff]
    %v1786 = vld [vmem:[%s1709 + $0x260] sm:$0xff]
    %v1787 = vld [vmem:[%s1709 + $0x268] sm:$0xff]
    %v1788 = vld [vmem:[%s1709 + $0x270] sm:$0xff]
    %v1789 = vld [vmem:[%s1709 + $0x278] sm:$0xff]
    %v1790 = vld [vmem:[%s1709 + $0x280] sm:$0xff]
    %v1791 = vld [vmem:[%s1709 + $0x288] sm:$0xff]
    %v1792 = vld [vmem:[%s1709 + $0x290] sm:$0xff]
    %v1793 = vld [vmem:[%s1709 + $0x298] sm:$0xff]
    %v1794 = vld [vmem:[%s1709 + $0x2a0] sm:$0xff]
    %v1795 = vld [vmem:[%s1709 + $0x2a8] sm:$0xff]
    %v1796 = vld [vmem:[%s1709 + $0x2b0] sm:$0xff]
    %v1797 = vld [vmem:[%s1709 + $0x2b8] sm:$0xff]
    %v1798 = vld [vmem:[%s1709 + $0x2c0] sm:$0xff]
    %v1799 = vld [vmem:[%s1709 + $0x2c8] sm:$0xff]
    %v1800 = vld [vmem:[%s1709 + $0x2d0] sm:$0xff]
    %v1801 = vld [vmem:[%s1709 + $0x2d8] sm:$0xff]
    %v1802 = vld [vmem:[%s1709 + $0x2e0] sm:$0xff]
    %v1803 = vld [vmem:[%s1709 + $0x2e8] sm:$0xff]
    %v1804 = vld [vmem:[%s1709 + $0x2f0] sm:$0xff]
    %v1805 = vld [vmem:[%s1709 + $0x2f8] sm:$0xff]
    %v1806 = vld [vmem:[%s1709 + $0x300] sm:$0xff]
    %v1807 = vld [vmem:[%s1709 + $0x308] sm:$0xff]
    %v1808 = vld [vmem:[%s1709 + $0x310] sm:$0xff]
    %v1809 = vld [vmem:[%s1709 + $0x318] sm:$0xff]
    %v1810 = vld [vmem:[%s1709 + $0x320] sm:$0xff]
    %v1811 = vld [vmem:[%s1709 + $0x328] sm:$0xff]
    %v1812 = vld [vmem:[%s1709 + $0x330] sm:$0xff]
    %v1813 = vld [vmem:[%s1709 + $0x338] sm:$0xff]
    %v1814 = vld [vmem:[%s1709 + $0x340] sm:$0xff]
    %v1815 = vld [vmem:[%s1709 + $0x348] sm:$0xff]
    %v1816 = vld [vmem:[%s1709 + $0x350] sm:$0xff]
    %v1817 = vld [vmem:[%s1709 + $0x358] sm:$0xff]
    %v1818 = vld [vmem:[%s1709 + $0x360] sm:$0xff]
    %v1819 = vld [vmem:[%s1709 + $0x368] sm:$0xff]
    %v1820 = vld [vmem:[%s1709 + $0x370] sm:$0xff]
    %v1821 = vld [vmem:[%s1709 + $0x378] sm:$0xff]
    %v1822 = vld [vmem:[%s1709 + $0x380] sm:$0xff]
    %v1823 = vld [vmem:[%s1709 + $0x388] sm:$0xff]
    %v1824 = vld [vmem:[%s1709 + $0x390] sm:$0xff]
    %v1825 = vld [vmem:[%s1709 + $0x398] sm:$0xff]
    %v1826 = vld [vmem:[%s1709 + $0x3a0] sm:$0xff]
    %v1827 = vld [vmem:[%s1709 + $0x3a8] sm:$0xff]
    %v1828 = vld [vmem:[%s1709 + $0x3b0] sm:$0xff]
    %v1829 = vld [vmem:[%s1709 + $0x3b8] sm:$0xff]
    %v1830 = vld [vmem:[%s1709 + $0x3c0] sm:$0xff]
    %v1831 = vld [vmem:[%s1709 + $0x3c8] sm:$0xff]
    %v1832 = vld [vmem:[%s1709 + $0x3d0] sm:$0xff]
    %v1833 = vld [vmem:[%s1709 + $0x3d8] sm:$0xff]
    %v1834 = vld [vmem:[%s1709 + $0x3e0] sm:$0xff]
    %v1835 = vld [vmem:[%s1709 + $0x3e8] sm:$0xff]
    %v1836 = vld [vmem:[%s1709 + $0x3f0] sm:$0xff]
    %v1837 = vld [vmem:[%s1709 + $0x3f8] sm:$0xff]
    %v1838 = vld [vmem:[%s1709 + $0x400] sm:$0xff]
    %v1839 = vld [vmem:[%s1709 + $0x408] sm:$0xff]
    %v1840 = vld [vmem:[%s1709 + $0x410] sm:$0xff]
    %v1841 = vld [vmem:[%s1709 + $0x418] sm:$0xff]
    %v1842 = vld [vmem:[%s1709 + $0x420] sm:$0xff]
    %v1843 = vld [vmem:[%s1709 + $0x428] sm:$0xff]
    %v1844 = vld [vmem:[%s1709 + $0x430] sm:$0xff]
    %v1845 = vld [vmem:[%s1709 + $0x438] sm:$0xff]
    %v1846 = vld [vmem:[%s1709 + $0x440] sm:$0xff]
    %v1847 = vld [vmem:[%s1709 + $0x448] sm:$0xff]
    %v1848 = vld [vmem:[%s1709 + $0x450] sm:$0xff]
    %v1849 = vld [vmem:[%s1709 + $0x458] sm:$0xff]
    %v1850 = vld [vmem:[%s1709 + $0x460] sm:$0xff]
    %v1851 = vld [vmem:[%s1709 + $0x468] sm:$0xff]
    %v1852 = vld [vmem:[%s1709 + $0x470] sm:$0xff]
    %v1853 = vld [vmem:[%s1709 + $0x478] sm:$0xff]
    %v1854 = vld [vmem:[%s1709 + $0x480] sm:$0xff]
    %v1855 = vld [vmem:[%s1709 + $0x488] sm:$0xff]
    %v1856 = vld [vmem:[%s1709 + $0x490] sm:$0xff]
    %v1857 = vld [vmem:[%s1709 + $0x498] sm:$0xff]
    %v1858 = vld [vmem:[%s1709 + $0x4a0] sm:$0xff]
    %v1859 = vld [vmem:[%s1709 + $0x4a8] sm:$0xff]
    %v1860 = vld [vmem:[%s1709 + $0x4b0] sm:$0xff]
    %v1861 = vld [vmem:[%s1709 + $0x4b8] sm:$0xff]
    %v1862 = vld [vmem:[%s1709 + $0x4c0] sm:$0xff]
    %v1863 = vld [vmem:[%s1709 + $0x4c8] sm:$0xff]
    %v1864 = vld [vmem:[%s1709 + $0x4d0] sm:$0xff]
    %v1865 = vld [vmem:[%s1709 + $0x4d8] sm:$0xff]
    %v1866 = vld [vmem:[%s1709 + $0x4e0] sm:$0xff]
    %v1867 = vld [vmem:[%s1709 + $0x4e8] sm:$0xff]
    %v1868 = vld [vmem:[%s1709 + $0x4f0] sm:$0xff]
    %v1869 = vld [vmem:[%s1709 + $0x4f8] sm:$0xff]
    %v1870 = vld [vmem:[%s1709 + $0x500] sm:$0xff]
    %v1871 = vld [vmem:[%s1709 + $0x508] sm:$0xff]
    %v1872 = vld [vmem:[%s1709 + $0x510] sm:$0xff]
    %v1873 = vld [vmem:[%s1709 + $0x518] sm:$0xff]
    %v1874 = vld [vmem:[%s1709 + $0x520] sm:$0xff]
    %v1875 = vld [vmem:[%s1709 + $0x528] sm:$0xff]
    %v1876 = vld [vmem:[%s1709 + $0x530] sm:$0xff]
    %v1877 = vld [vmem:[%s1709 + $0x538] sm:$0xff]
    %v1878 = vld [vmem:[%s1709 + $0x540] sm:$0xff]
    %v1879 = vld [vmem:[%s1709 + $0x548] sm:$0xff]
    %v1880 = vld [vmem:[%s1709 + $0x550] sm:$0xff]
    %v1881 = vld [vmem:[%s1709 + $0x558] sm:$0xff]
    %v1882 = vld [vmem:[%s1709 + $0x560] sm:$0xff]
    %v1883 = vld [vmem:[%s1709 + $0x568] sm:$0xff]
    %v1884 = vld [vmem:[%s1709 + $0x570] sm:$0xff]
    %v1885 = vld [vmem:[%s1709 + $0x578] sm:$0xff]
    %v1886 = vld [vmem:[%s1709 + $0x580] sm:$0xff]
    %v1887 = vld [vmem:[%s1709 + $0x588] sm:$0xff]
    %v1888 = vld [vmem:[%s1709 + $0x590] sm:$0xff]
    %v1889 = vld [vmem:[%s1709 + $0x598] sm:$0xff]
    %v1890 = vld [vmem:[%s1709 + $0x5a0] sm:$0xff]
    %v1891 = vld [vmem:[%s1709 + $0x5a8] sm:$0xff]
    %v1892 = vld [vmem:[%s1709 + $0x5b0] sm:$0xff]
    %v1893 = vld [vmem:[%s1709 + $0x5b8] sm:$0xff]
    %v1894 = vld [vmem:[%s1709 + $0x5c0] sm:$0xff]
    %v1895 = vld [vmem:[%s1709 + $0x5c8] sm:$0xff]
    %v1896 = vld [vmem:[%s1709 + $0x5d0] sm:$0xff]
    %v1897 = vld [vmem:[%s1709 + $0x5d8] sm:$0xff]
    %v1898 = vld [vmem:[%s1709 + $0x5e0] sm:$0xff]
    %v1899 = vld [vmem:[%s1709 + $0x5e8] sm:$0xff]
    %v1900 = vld [vmem:[%s1709 + $0x5f0] sm:$0xff]
    %v1901 = vld [vmem:[%s1709 + $0x5f8] sm:$0xff]
    %v1902 = vld [vmem:[%s1709 + $0x600] sm:$0xff]
    %v1903 = vld [vmem:[%s1709 + $0x608] sm:$0xff]
    %v1904 = vld [vmem:[%s1709 + $0x610] sm:$0xff]
    %v1905 = vld [vmem:[%s1709 + $0x618] sm:$0xff]
    %v1906 = vld [vmem:[%s1709 + $0x620] sm:$0xff]
    %v1907 = vld [vmem:[%s1709 + $0x628] sm:$0xff]
    %v1908 = vld [vmem:[%s1709 + $0x630] sm:$0xff]
    %v1909 = vld [vmem:[%s1709 + $0x638] sm:$0xff]
    %v1910 = vld [vmem:[%s1709 + $0x640] sm:$0xff]
    %v1911 = vld [vmem:[%s1709 + $0x648] sm:$0xff]
    %v1912 = vld [vmem:[%s1709 + $0x650] sm:$0xff]
    %v1913 = vld [vmem:[%s1709 + $0x658] sm:$0xff]
    %v1914 = vld [vmem:[%s1709 + $0x660] sm:$0xff]
    %v1915 = vld [vmem:[%s1709 + $0x668] sm:$0xff]
    %v1916 = vld [vmem:[%s1709 + $0x670] sm:$0xff]
    %v1917 = vld [vmem:[%s1709 + $0x678] sm:$0xff]
    %v1918 = vld [vmem:[%s1709 + $0x680] sm:$0xff]
    %v1919 = vld [vmem:[%s1709 + $0x688] sm:$0xff]
    %v1920 = vld [vmem:[%s1709 + $0x690] sm:$0xff]
    %v1921 = vld [vmem:[%s1709 + $0x698] sm:$0xff]
    %v1922 = vld [vmem:[%s1709 + $0x6a0] sm:$0xff]
    %v1923 = vld [vmem:[%s1709 + $0x6a8] sm:$0xff]
    %v1924 = vld [vmem:[%s1709 + $0x6b0] sm:$0xff]
    %v1925 = vld [vmem:[%s1709 + $0x6b8] sm:$0xff]
    %v1926 = vld [vmem:[%s1709 + $0x6c0] sm:$0xff]
    %v1927 = vld [vmem:[%s1709 + $0x6c8] sm:$0xff]
    %v1928 = vld [vmem:[%s1709 + $0x6d0] sm:$0xff]
    %v1929 = vld [vmem:[%s1709 + $0x6d8] sm:$0xff]
    %v1930 = vld [vmem:[%s1709 + $0x6e0] sm:$0xff]
    %v1931 = vld [vmem:[%s1709 + $0x6e8] sm:$0xff]
    %v1932 = vld [vmem:[%s1709 + $0x6f0] sm:$0xff]
    %v1933 = vld [vmem:[%s1709 + $0x6f8] sm:$0xff]
    %v2158 = vunpack.c.l.b16 %v1710
    %v2159 = vunpack.c.h.b16 %v1710
    %v2160 = vunpack.c.l.b16 %v1711
    %v2161 = vunpack.c.h.b16 %v1711
    %v2162 = vunpack.c.l.b16 %v1712
    %v2163 = vunpack.c.h.b16 %v1712
    %v2164 = vunpack.c.l.b16 %v1713
    %v2165 = vunpack.c.h.b16 %v1713
    %v2166 = vunpack.c.l.b16 %v1714
    %v2167 = vunpack.c.h.b16 %v1714
    %v2168 = vunpack.c.l.b16 %v1715
    %v2169 = vunpack.c.h.b16 %v1715
    %v2170 = vunpack.c.l.b16 %v1716
    %v2171 = vunpack.c.h.b16 %v1716
    %v2172 = vunpack.c.l.b16 %v1717
    %v2173 = vunpack.c.h.b16 %v1717
    %v2174 = vunpack.c.l.b16 %v1718
    %v2175 = vunpack.c.h.b16 %v1718
    %v2176 = vunpack.c.l.b16 %v1719
    %v2177 = vunpack.c.h.b16 %v1719
    %v2178 = vunpack.c.l.b16 %v1720
    %v2179 = vunpack.c.h.b16 %v1720
    %v2180 = vunpack.c.l.b16 %v1721
    %v2181 = vunpack.c.h.b16 %v1721
    %v2182 = vunpack.c.l.b16 %v1722
    %v2183 = vunpack.c.h.b16 %v1722
    %v2184 = vunpack.c.l.b16 %v1723
    %v2185 = vunpack.c.h.b16 %v1723
    %v2186 = vunpack.c.l.b16 %v1724
    %v2187 = vunpack.c.h.b16 %v1724
    %v2188 = vunpack.c.l.b16 %v1725
    %v2189 = vunpack.c.h.b16 %v1725
    %v2190 = vunpack.c.l.b16 %v1726
    %v2191 = vunpack.c.h.b16 %v1726
    %v2192 = vunpack.c.l.b16 %v1727
    %v2193 = vunpack.c.h.b16 %v1727
    %v2194 = vunpack.c.l.b16 %v1728
    %v2195 = vunpack.c.h.b16 %v1728
    %v2196 = vunpack.c.l.b16 %v1729
    %v2197 = vunpack.c.h.b16 %v1729
    %v2198 = vunpack.c.l.b16 %v1730
    %v2199 = vunpack.c.h.b16 %v1730
    %v2200 = vunpack.c.l.b16 %v1731
    %v2201 = vunpack.c.h.b16 %v1731
    %v2202 = vunpack.c.l.b16 %v1732
    %v2203 = vunpack.c.h.b16 %v1732
    %v2204 = vunpack.c.l.b16 %v1733
    %v2205 = vunpack.c.h.b16 %v1733
    %v2206 = vunpack.c.l.b16 %v1734
    %v2207 = vunpack.c.h.b16 %v1734
    %v2208 = vunpack.c.l.b16 %v1735
    %v2209 = vunpack.c.h.b16 %v1735
    %v2210 = vunpack.c.l.b16 %v1736
    %v2211 = vunpack.c.h.b16 %v1736
    %v2212 = vunpack.c.l.b16 %v1737
    %v2213 = vunpack.c.h.b16 %v1737
    %v2214 = vunpack.c.l.b16 %v1738
    %v2215 = vunpack.c.h.b16 %v1738
    %v2216 = vunpack.c.l.b16 %v1739
    %v2217 = vunpack.c.h.b16 %v1739
    %v2218 = vunpack.c.l.b16 %v1740
    %v2219 = vunpack.c.h.b16 %v1740
    %v2220 = vunpack.c.l.b16 %v1741
    %v2221 = vunpack.c.h.b16 %v1741
    %v2222 = vunpack.c.l.b16 %v1742
    %v2223 = vunpack.c.h.b16 %v1742
    %v2224 = vunpack.c.l.b16 %v1743
    %v2225 = vunpack.c.h.b16 %v1743
    %v2226 = vunpack.c.l.b16 %v1744
    %v2227 = vunpack.c.h.b16 %v1744
    %v2228 = vunpack.c.l.b16 %v1745
    %v2229 = vunpack.c.h.b16 %v1745
    %v2230 = vunpack.c.l.b16 %v1746
    %v2231 = vunpack.c.h.b16 %v1746
    %v2232 = vunpack.c.l.b16 %v1747
    %v2233 = vunpack.c.h.b16 %v1747
    %v2234 = vunpack.c.l.b16 %v1748
    %v2235 = vunpack.c.h.b16 %v1748
    %v2236 = vunpack.c.l.b16 %v1749
    %v2237 = vunpack.c.h.b16 %v1749
    %v2238 = vunpack.c.l.b16 %v1750
    %v2239 = vunpack.c.h.b16 %v1750
    %v2240 = vunpack.c.l.b16 %v1751
    %v2241 = vunpack.c.h.b16 %v1751
    %v2242 = vunpack.c.l.b16 %v1752
    %v2243 = vunpack.c.h.b16 %v1752
    %v2244 = vunpack.c.l.b16 %v1753
    %v2245 = vunpack.c.h.b16 %v1753
    %v2246 = vunpack.c.l.b16 %v1754
    %v2247 = vunpack.c.h.b16 %v1754
    %v2248 = vunpack.c.l.b16 %v1755
    %v2249 = vunpack.c.h.b16 %v1755
    %v2250 = vunpack.c.l.b16 %v1756
    %v2251 = vunpack.c.h.b16 %v1756
    %v2252 = vunpack.c.l.b16 %v1757
    %v2253 = vunpack.c.h.b16 %v1757
    %v2254 = vunpack.c.l.b16 %v1758
    %v2255 = vunpack.c.h.b16 %v1758
    %v2256 = vunpack.c.l.b16 %v1759
    %v2257 = vunpack.c.h.b16 %v1759
    %v2258 = vunpack.c.l.b16 %v1760
    %v2259 = vunpack.c.h.b16 %v1760
    %v2260 = vunpack.c.l.b16 %v1761
    %v2261 = vunpack.c.h.b16 %v1761
    %v2262 = vunpack.c.l.b16 %v1762
    %v2263 = vunpack.c.h.b16 %v1762
    %v2264 = vunpack.c.l.b16 %v1763
    %v2265 = vunpack.c.h.b16 %v1763
    %v2266 = vunpack.c.l.b16 %v1764
    %v2267 = vunpack.c.h.b16 %v1764
    %v2268 = vunpack.c.l.b16 %v1765
    %v2269 = vunpack.c.h.b16 %v1765
    %v2270 = vunpack.c.l.b16 %v1766
    %v2271 = vunpack.c.h.b16 %v1766
    %v2272 = vunpack.c.l.b16 %v1767
    %v2273 = vunpack.c.h.b16 %v1767
    %v2274 = vunpack.c.l.b16 %v1768
    %v2275 = vunpack.c.h.b16 %v1768
    %v2276 = vunpack.c.l.b16 %v1769
    %v2277 = vunpack.c.h.b16 %v1769
    %v2278 = vunpack.c.l.b16 %v1770
    %v2279 = vunpack.c.h.b16 %v1770
    %v2280 = vunpack.c.l.b16 %v1771
    %v2281 = vunpack.c.h.b16 %v1771
    %v2282 = vunpack.c.l.b16 %v1772
    %v2283 = vunpack.c.h.b16 %v1772
    %v2284 = vunpack.c.l.b16 %v1773
    %v2285 = vunpack.c.h.b16 %v1773
    %v2286 = vunpack.c.l.b16 %v1774
    %v2287 = vunpack.c.h.b16 %v1774
    %v2288 = vunpack.c.l.b16 %v1775
    %v2289 = vunpack.c.h.b16 %v1775
    %v2290 = vunpack.c.l.b16 %v1776
    %v2291 = vunpack.c.h.b16 %v1776
    %v2292 = vunpack.c.l.b16 %v1777
    %v2293 = vunpack.c.h.b16 %v1777
    %v2294 = vunpack.c.l.b16 %v1778
    %v2295 = vunpack.c.h.b16 %v1778
    %v2296 = vunpack.c.l.b16 %v1779
    %v2297 = vunpack.c.h.b16 %v1779
    %v2298 = vunpack.c.l.b16 %v1780
    %v2299 = vunpack.c.h.b16 %v1780
    %v2300 = vunpack.c.l.b16 %v1781
    %v2301 = vunpack.c.h.b16 %v1781
    %v2302 = vunpack.c.l.b16 %v1782
    %v2303 = vunpack.c.h.b16 %v1782
    %v2304 = vunpack.c.l.b16 %v1783
    %v2305 = vunpack.c.h.b16 %v1783
    %v2306 = vunpack.c.l.b16 %v1784
    %v2307 = vunpack.c.h.b16 %v1784
    %v2308 = vunpack.c.l.b16 %v1785
    %v2309 = vunpack.c.h.b16 %v1785
    %v2310 = vunpack.c.l.b16 %v1786
    %v2311 = vunpack.c.h.b16 %v1786
    %v2312 = vunpack.c.l.b16 %v1787
    %v2313 = vunpack.c.h.b16 %v1787
    %v2314 = vunpack.c.l.b16 %v1788
    %v2315 = vunpack.c.h.b16 %v1788
    %v2316 = vunpack.c.l.b16 %v1789
    %v2317 = vunpack.c.h.b16 %v1789
    %v2318 = vunpack.c.l.b16 %v1790
    %v2319 = vunpack.c.h.b16 %v1790
    %v2320 = vunpack.c.l.b16 %v1791
    %v2321 = vunpack.c.h.b16 %v1791
    %v2322 = vunpack.c.l.b16 %v1792
    %v2323 = vunpack.c.h.b16 %v1792
    %v2324 = vunpack.c.l.b16 %v1793
    %v2325 = vunpack.c.h.b16 %v1793
    %v2326 = vunpack.c.l.b16 %v1794
    %v2327 = vunpack.c.h.b16 %v1794
    %v2328 = vunpack.c.l.b16 %v1795
    %v2329 = vunpack.c.h.b16 %v1795
    %v2330 = vunpack.c.l.b16 %v1796
    %v2331 = vunpack.c.h.b16 %v1796
    %v2332 = vunpack.c.l.b16 %v1797
    %v2333 = vunpack.c.h.b16 %v1797
    %v2334 = vunpack.c.l.b16 %v1798
    %v2335 = vunpack.c.h.b16 %v1798
    %v2336 = vunpack.c.l.b16 %v1799
    %v2337 = vunpack.c.h.b16 %v1799
    %v2338 = vunpack.c.l.b16 %v1800
    %v2339 = vunpack.c.h.b16 %v1800
    %v2340 = vunpack.c.l.b16 %v1801
    %v2341 = vunpack.c.h.b16 %v1801
    %v2342 = vunpack.c.l.b16 %v1802
    %v2343 = vunpack.c.h.b16 %v1802
    %v2344 = vunpack.c.l.b16 %v1803
    %v2345 = vunpack.c.h.b16 %v1803
    %v2346 = vunpack.c.l.b16 %v1804
    %v2347 = vunpack.c.h.b16 %v1804
    %v2348 = vunpack.c.l.b16 %v1805
    %v2349 = vunpack.c.h.b16 %v1805
    %v2350 = vunpack.c.l.b16 %v1806
    %v2351 = vunpack.c.h.b16 %v1806
    %v2352 = vunpack.c.l.b16 %v1807
    %v2353 = vunpack.c.h.b16 %v1807
    %v2354 = vunpack.c.l.b16 %v1808
    %v2355 = vunpack.c.h.b16 %v1808
    %v2356 = vunpack.c.l.b16 %v1809
    %v2357 = vunpack.c.h.b16 %v1809
    %v2358 = vunpack.c.l.b16 %v1810
    %v2359 = vunpack.c.h.b16 %v1810
    %v2360 = vunpack.c.l.b16 %v1811
    %v2361 = vunpack.c.h.b16 %v1811
    %v2362 = vunpack.c.l.b16 %v1812
    %v2363 = vunpack.c.h.b16 %v1812
    %v2364 = vunpack.c.l.b16 %v1813
    %v2365 = vunpack.c.h.b16 %v1813
    %v2366 = vunpack.c.l.b16 %v1814
    %v2367 = vunpack.c.h.b16 %v1814
    %v2368 = vunpack.c.l.b16 %v1815
    %v2369 = vunpack.c.h.b16 %v1815
    %v2370 = vunpack.c.l.b16 %v1816
    %v2371 = vunpack.c.h.b16 %v1816
    %v2372 = vunpack.c.l.b16 %v1817
    %v2373 = vunpack.c.h.b16 %v1817
    %v2374 = vunpack.c.l.b16 %v1818
    %v2375 = vunpack.c.h.b16 %v1818
    %v2376 = vunpack.c.l.b16 %v1819
    %v2377 = vunpack.c.h.b16 %v1819
    %v2378 = vunpack.c.l.b16 %v1820
    %v2379 = vunpack.c.h.b16 %v1820
    %v2380 = vunpack.c.l.b16 %v1821
    %v2381 = vunpack.c.h.b16 %v1821
    %v2382 = vunpack.c.l.b16 %v1822
    %v2383 = vunpack.c.h.b16 %v1822
    %v2384 = vunpack.c.l.b16 %v1823
    %v2385 = vunpack.c.h.b16 %v1823
    %v2386 = vunpack.c.l.b16 %v1824
    %v2387 = vunpack.c.h.b16 %v1824
    %v2388 = vunpack.c.l.b16 %v1825
    %v2389 = vunpack.c.h.b16 %v1825
    %v2390 = vunpack.c.l.b16 %v1826
    %v2391 = vunpack.c.h.b16 %v1826
    %v2392 = vunpack.c.l.b16 %v1827
    %v2393 = vunpack.c.h.b16 %v1827
    %v2394 = vunpack.c.l.b16 %v1828
    %v2395 = vunpack.c.h.b16 %v1828
    %v2396 = vunpack.c.l.b16 %v1829
    %v2397 = vunpack.c.h.b16 %v1829
    %v2398 = vunpack.c.l.b16 %v1830
    %v2399 = vunpack.c.h.b16 %v1830
    %v2400 = vunpack.c.l.b16 %v1831
    %v2401 = vunpack.c.h.b16 %v1831
    %v2402 = vunpack.c.l.b16 %v1832
    %v2403 = vunpack.c.h.b16 %v1832
    %v2404 = vunpack.c.l.b16 %v1833
    %v2405 = vunpack.c.h.b16 %v1833
    %v2406 = vunpack.c.l.b16 %v1834
    %v2407 = vunpack.c.h.b16 %v1834
    %v2408 = vunpack.c.l.b16 %v1835
    %v2409 = vunpack.c.h.b16 %v1835
    %v2410 = vunpack.c.l.b16 %v1836
    %v2411 = vunpack.c.h.b16 %v1836
    %v2412 = vunpack.c.l.b16 %v1837
    %v2413 = vunpack.c.h.b16 %v1837
    %v2414 = vunpack.c.l.b16 %v1838
    %v2415 = vunpack.c.h.b16 %v1838
    %v2416 = vunpack.c.l.b16 %v1839
    %v2417 = vunpack.c.h.b16 %v1839
    %v2418 = vunpack.c.l.b16 %v1840
    %v2419 = vunpack.c.h.b16 %v1840
    %v2420 = vunpack.c.l.b16 %v1841
    %v2421 = vunpack.c.h.b16 %v1841
    %v2422 = vunpack.c.l.b16 %v1842
    %v2423 = vunpack.c.h.b16 %v1842
    %v2424 = vunpack.c.l.b16 %v1843
    %v2425 = vunpack.c.h.b16 %v1843
    %v2426 = vunpack.c.l.b16 %v1844
    %v2427 = vunpack.c.h.b16 %v1844
    %v2428 = vunpack.c.l.b16 %v1845
    %v2429 = vunpack.c.h.b16 %v1845
    %v2430 = vunpack.c.l.b16 %v1846
    %v2431 = vunpack.c.h.b16 %v1846
    %v2432 = vunpack.c.l.b16 %v1847
    %v2433 = vunpack.c.h.b16 %v1847
    %v2434 = vunpack.c.l.b16 %v1848
    %v2435 = vunpack.c.h.b16 %v1848
    %v2436 = vunpack.c.l.b16 %v1849
    %v2437 = vunpack.c.h.b16 %v1849
    %v2438 = vunpack.c.l.b16 %v1850
    %v2439 = vunpack.c.h.b16 %v1850
    %v2440 = vunpack.c.l.b16 %v1851
    %v2441 = vunpack.c.h.b16 %v1851
    %v2442 = vunpack.c.l.b16 %v1852
    %v2443 = vunpack.c.h.b16 %v1852
    %v2444 = vunpack.c.l.b16 %v1853
    %v2445 = vunpack.c.h.b16 %v1853
    %v2446 = vunpack.c.l.b16 %v1854
    %v2447 = vunpack.c.h.b16 %v1854
    %v2448 = vunpack.c.l.b16 %v1855
    %v2449 = vunpack.c.h.b16 %v1855
    %v2450 = vunpack.c.l.b16 %v1856
    %v2451 = vunpack.c.h.b16 %v1856
    %v2452 = vunpack.c.l.b16 %v1857
    %v2453 = vunpack.c.h.b16 %v1857
    %v2454 = vunpack.c.l.b16 %v1858
    %v2455 = vunpack.c.h.b16 %v1858
    %v2456 = vunpack.c.l.b16 %v1859
    %v2457 = vunpack.c.h.b16 %v1859
    %v2458 = vunpack.c.l.b16 %v1860
    %v2459 = vunpack.c.h.b16 %v1860
    %v2460 = vunpack.c.l.b16 %v1861
    %v2461 = vunpack.c.h.b16 %v1861
    %v2462 = vunpack.c.l.b16 %v1862
    %v2463 = vunpack.c.h.b16 %v1862
    %v2464 = vunpack.c.l.b16 %v1863
    %v2465 = vunpack.c.h.b16 %v1863
    %v2466 = vunpack.c.l.b16 %v1864
    %v2467 = vunpack.c.h.b16 %v1864
    %v2468 = vunpack.c.l.b16 %v1865
    %v2469 = vunpack.c.h.b16 %v1865
    %v2470 = vunpack.c.l.b16 %v1866
    %v2471 = vunpack.c.h.b16 %v1866
    %v2472 = vunpack.c.l.b16 %v1867
    %v2473 = vunpack.c.h.b16 %v1867
    %v2474 = vunpack.c.l.b16 %v1868
    %v2475 = vunpack.c.h.b16 %v1868
    %v2476 = vunpack.c.l.b16 %v1869
    %v2477 = vunpack.c.h.b16 %v1869
    %v2478 = vunpack.c.l.b16 %v1870
    %v2479 = vunpack.c.h.b16 %v1870
    %v2480 = vunpack.c.l.b16 %v1871
    %v2481 = vunpack.c.h.b16 %v1871
    %v2482 = vunpack.c.l.b16 %v1872
    %v2483 = vunpack.c.h.b16 %v1872
    %v2484 = vunpack.c.l.b16 %v1873
    %v2485 = vunpack.c.h.b16 %v1873
    %v2486 = vunpack.c.l.b16 %v1874
    %v2487 = vunpack.c.h.b16 %v1874
    %v2488 = vunpack.c.l.b16 %v1875
    %v2489 = vunpack.c.h.b16 %v1875
    %v2490 = vunpack.c.l.b16 %v1876
    %v2491 = vunpack.c.h.b16 %v1876
    %v2492 = vunpack.c.l.b16 %v1877
    %v2493 = vunpack.c.h.b16 %v1877
    %v2494 = vunpack.c.l.b16 %v1878
    %v2495 = vunpack.c.h.b16 %v1878
    %v2496 = vunpack.c.l.b16 %v1879
    %v2497 = vunpack.c.h.b16 %v1879
    %v2498 = vunpack.c.l.b16 %v1880
    %v2499 = vunpack.c.h.b16 %v1880
    %v2500 = vunpack.c.l.b16 %v1881
    %v2501 = vunpack.c.h.b16 %v1881
    %v2502 = vunpack.c.l.b16 %v1882
    %v2503 = vunpack.c.h.b16 %v1882
    %v2504 = vunpack.c.l.b16 %v1883
    %v2505 = vunpack.c.h.b16 %v1883
    %v2506 = vunpack.c.l.b16 %v1884
    %v2507 = vunpack.c.h.b16 %v1884
    %v2508 = vunpack.c.l.b16 %v1885
    %v2509 = vunpack.c.h.b16 %v1885
    %v2510 = vunpack.c.l.b16 %v1886
    %v2511 = vunpack.c.h.b16 %v1886
    %v2512 = vunpack.c.l.b16 %v1887
    %v2513 = vunpack.c.h.b16 %v1887
    %v2514 = vunpack.c.l.b16 %v1888
    %v2515 = vunpack.c.h.b16 %v1888
    %v2516 = vunpack.c.l.b16 %v1889
    %v2517 = vunpack.c.h.b16 %v1889
    %v2518 = vunpack.c.l.b16 %v1890
    %v2519 = vunpack.c.h.b16 %v1890
    %v2520 = vunpack.c.l.b16 %v1891
    %v2521 = vunpack.c.h.b16 %v1891
    %v2522 = vunpack.c.l.b16 %v1892
    %v2523 = vunpack.c.h.b16 %v1892
    %v2524 = vunpack.c.l.b16 %v1893
    %v2525 = vunpack.c.h.b16 %v1893
    %v2526 = vunpack.c.l.b16 %v1894
    %v2527 = vunpack.c.h.b16 %v1894
    %v2528 = vunpack.c.l.b16 %v1895
    %v2529 = vunpack.c.h.b16 %v1895
    %v2530 = vunpack.c.l.b16 %v1896
    %v2531 = vunpack.c.h.b16 %v1896
    %v2532 = vunpack.c.l.b16 %v1897
    %v2533 = vunpack.c.h.b16 %v1897
    %v2534 = vunpack.c.l.b16 %v1898
    %v2535 = vunpack.c.h.b16 %v1898
    %v2536 = vunpack.c.l.b16 %v1899
    %v2537 = vunpack.c.h.b16 %v1899
    %v2538 = vunpack.c.l.b16 %v1900
    %v2539 = vunpack.c.h.b16 %v1900
    %v2540 = vunpack.c.l.b16 %v1901
    %v2541 = vunpack.c.h.b16 %v1901
    %v2542 = vunpack.c.l.b16 %v1902
    %v2543 = vunpack.c.h.b16 %v1902
    %v2544 = vunpack.c.l.b16 %v1903
    %v2545 = vunpack.c.h.b16 %v1903
    %v2546 = vunpack.c.l.b16 %v1904
    %v2547 = vunpack.c.h.b16 %v1904
    %v2548 = vunpack.c.l.b16 %v1905
    %v2549 = vunpack.c.h.b16 %v1905
    %v2550 = vunpack.c.l.b16 %v1906
    %v2551 = vunpack.c.h.b16 %v1906
    %v2552 = vunpack.c.l.b16 %v1907
    %v2553 = vunpack.c.h.b16 %v1907
    %v2554 = vunpack.c.l.b16 %v1908
    %v2555 = vunpack.c.h.b16 %v1908
    %v2556 = vunpack.c.l.b16 %v1909
    %v2557 = vunpack.c.h.b16 %v1909
    %v2558 = vunpack.c.l.b16 %v1910
    %v2559 = vunpack.c.h.b16 %v1910
    %v2560 = vunpack.c.l.b16 %v1911
    %v2561 = vunpack.c.h.b16 %v1911
    %v2562 = vunpack.c.l.b16 %v1912
    %v2563 = vunpack.c.h.b16 %v1912
    %v2564 = vunpack.c.l.b16 %v1913
    %v2565 = vunpack.c.h.b16 %v1913
    %v2566 = vunpack.c.l.b16 %v1914
    %v2567 = vunpack.c.h.b16 %v1914
    %v2568 = vunpack.c.l.b16 %v1915
    %v2569 = vunpack.c.h.b16 %v1915
    %v2570 = vunpack.c.l.b16 %v1916
    %v2571 = vunpack.c.h.b16 %v1916
    %v2572 = vunpack.c.l.b16 %v1917
    %v2573 = vunpack.c.h.b16 %v1917
    %v2574 = vunpack.c.l.b16 %v1918
    %v2575 = vunpack.c.h.b16 %v1918
    %v2576 = vunpack.c.l.b16 %v1919
    %v2577 = vunpack.c.h.b16 %v1919
    %v2578 = vunpack.c.l.b16 %v1920
    %v2579 = vunpack.c.h.b16 %v1920
    %v2580 = vunpack.c.l.b16 %v1921
    %v2581 = vunpack.c.h.b16 %v1921
    %v2582 = vunpack.c.l.b16 %v1922
    %v2583 = vunpack.c.h.b16 %v1922
    %v2584 = vunpack.c.l.b16 %v1923
    %v2585 = vunpack.c.h.b16 %v1923
    %v2586 = vunpack.c.l.b16 %v1924
    %v2587 = vunpack.c.h.b16 %v1924
    %v2588 = vunpack.c.l.b16 %v1925
    %v2589 = vunpack.c.h.b16 %v1925
    %v2590 = vunpack.c.l.b16 %v1926
    %v2591 = vunpack.c.h.b16 %v1926
    %v2592 = vunpack.c.l.b16 %v1927
    %v2593 = vunpack.c.h.b16 %v1927
    %v2594 = vunpack.c.l.b16 %v1928
    %v2595 = vunpack.c.h.b16 %v1928
    %v2596 = vunpack.c.l.b16 %v1929
    %v2597 = vunpack.c.h.b16 %v1929
    %v2598 = vunpack.c.l.b16 %v1930
    %v2599 = vunpack.c.h.b16 %v1930
    %v2600 = vunpack.c.l.b16 %v1931
    %v2601 = vunpack.c.h.b16 %v1931
    %v2602 = vunpack.c.l.b16 %v1932
    %v2603 = vunpack.c.h.b16 %v1932
    %v2604 = vunpack.c.l.b16 %v1933
    %v2605 = vunpack.c.h.b16 %v1933
    %v2606 = vpack.c.b16 %v2160, %v2158
    %v2607 = vpack.c.b16 %v2161, %v2159
    %v2608 = vpack.c.b16 %v2164, %v2162
    %v2609 = vpack.c.b16 %v2165, %v2163
    %v2610 = vpack.c.b16 %v2168, %v2166
    %v2611 = vpack.c.b16 %v2169, %v2167
    %v2612 = vpack.c.b16 %v2172, %v2170
    %v2613 = vpack.c.b16 %v2173, %v2171
    %v2614 = vpack.c.b16 %v2176, %v2174
    %v2615 = vpack.c.b16 %v2177, %v2175
    %v2616 = vpack.c.b16 %v2180, %v2178
    %v2617 = vpack.c.b16 %v2181, %v2179
    %v2618 = vpack.c.b16 %v2184, %v2182
    %v2619 = vpack.c.b16 %v2185, %v2183
    %v2620 = vpack.c.b16 %v2188, %v2186
    %v2621 = vpack.c.b16 %v2189, %v2187
    %v2622 = vpack.c.b16 %v2192, %v2190
    %v2623 = vpack.c.b16 %v2193, %v2191
    %v2624 = vpack.c.b16 %v2196, %v2194
    %v2625 = vpack.c.b16 %v2197, %v2195
    %v2626 = vpack.c.b16 %v2200, %v2198
    %v2627 = vpack.c.b16 %v2201, %v2199
    %v2628 = vpack.c.b16 %v2204, %v2202
    %v2629 = vpack.c.b16 %v2205, %v2203
    %v2630 = vpack.c.b16 %v2208, %v2206
    %v2631 = vpack.c.b16 %v2209, %v2207
    %v2632 = vpack.c.b16 %v2212, %v2210
    %v2633 = vpack.c.b16 %v2213, %v2211
    %v2634 = vpack.c.b16 %v2216, %v2214
    %v2635 = vpack.c.b16 %v2217, %v2215
    %v2636 = vpack.c.b16 %v2220, %v2218
    %v2637 = vpack.c.b16 %v2221, %v2219
    %v2638 = vpack.c.b16 %v2224, %v2222
    %v2639 = vpack.c.b16 %v2225, %v2223
    %v2640 = vpack.c.b16 %v2228, %v2226
    %v2641 = vpack.c.b16 %v2229, %v2227
    %v2642 = vpack.c.b16 %v2232, %v2230
    %v2643 = vpack.c.b16 %v2233, %v2231
    %v2644 = vpack.c.b16 %v2236, %v2234
    %v2645 = vpack.c.b16 %v2237, %v2235
    %v2646 = vpack.c.b16 %v2240, %v2238
    %v2647 = vpack.c.b16 %v2241, %v2239
    %v2648 = vpack.c.b16 %v2244, %v2242
    %v2649 = vpack.c.b16 %v2245, %v2243
    %v2650 = vpack.c.b16 %v2248, %v2246
    %v2651 = vpack.c.b16 %v2249, %v2247
    %v2652 = vpack.c.b16 %v2252, %v2250
    %v2653 = vpack.c.b16 %v2253, %v2251
    %v2654 = vpack.c.b16 %v2256, %v2254
    %v2655 = vpack.c.b16 %v2257, %v2255
    %v2656 = vpack.c.b16 %v2260, %v2258
    %v2657 = vpack.c.b16 %v2261, %v2259
    %v2658 = vpack.c.b16 %v2264, %v2262
    %v2659 = vpack.c.b16 %v2265, %v2263
    %v2660 = vpack.c.b16 %v2268, %v2266
    %v2661 = vpack.c.b16 %v2269, %v2267
    %v2662 = vpack.c.b16 %v2272, %v2270
    %v2663 = vpack.c.b16 %v2273, %v2271
    %v2664 = vpack.c.b16 %v2276, %v2274
    %v2665 = vpack.c.b16 %v2277, %v2275
    %v2666 = vpack.c.b16 %v2280, %v2278
    %v2667 = vpack.c.b16 %v2281, %v2279
    %v2668 = vpack.c.b16 %v2284, %v2282
    %v2669 = vpack.c.b16 %v2285, %v2283
    %v2670 = vpack.c.b16 %v2288, %v2286
    %v2671 = vpack.c.b16 %v2289, %v2287
    %v2672 = vpack.c.b16 %v2292, %v2290
    %v2673 = vpack.c.b16 %v2293, %v2291
    %v2674 = vpack.c.b16 %v2296, %v2294
    %v2675 = vpack.c.b16 %v2297, %v2295
    %v2676 = vpack.c.b16 %v2300, %v2298
    %v2677 = vpack.c.b16 %v2301, %v2299
    %v2678 = vpack.c.b16 %v2304, %v2302
    %v2679 = vpack.c.b16 %v2305, %v2303
    %v2680 = vpack.c.b16 %v2308, %v2306
    %v2681 = vpack.c.b16 %v2309, %v2307
    %v2682 = vpack.c.b16 %v2312, %v2310
    %v2683 = vpack.c.b16 %v2313, %v2311
    %v2684 = vpack.c.b16 %v2316, %v2314
    %v2685 = vpack.c.b16 %v2317, %v2315
    %v2686 = vpack.c.b16 %v2320, %v2318
    %v2687 = vpack.c.b16 %v2321, %v2319
    %v2688 = vpack.c.b16 %v2324, %v2322
    %v2689 = vpack.c.b16 %v2325, %v2323
    %v2690 = vpack.c.b16 %v2328, %v2326
    %v2691 = vpack.c.b16 %v2329, %v2327
    %v2692 = vpack.c.b16 %v2332, %v2330
    %v2693 = vpack.c.b16 %v2333, %v2331
    %v2694 = vpack.c.b16 %v2336, %v2334
    %v2695 = vpack.c.b16 %v2337, %v2335
    %v2696 = vpack.c.b16 %v2340, %v2338
    %v2697 = vpack.c.b16 %v2341, %v2339
    %v2698 = vpack.c.b16 %v2344, %v2342
    %v2699 = vpack.c.b16 %v2345, %v2343
    %v2700 = vpack.c.b16 %v2348, %v2346
    %v2701 = vpack.c.b16 %v2349, %v2347
    %v2702 = vpack.c.b16 %v2352, %v2350
    %v2703 = vpack.c.b16 %v2353, %v2351
    %v2704 = vpack.c.b16 %v2356, %v2354
    %v2705 = vpack.c.b16 %v2357, %v2355
    %v2706 = vpack.c.b16 %v2360, %v2358
    %v2707 = vpack.c.b16 %v2361, %v2359
    %v2708 = vpack.c.b16 %v2364, %v2362
    %v2709 = vpack.c.b16 %v2365, %v2363
    %v2710 = vpack.c.b16 %v2368, %v2366
    %v2711 = vpack.c.b16 %v2369, %v2367
    %v2712 = vpack.c.b16 %v2372, %v2370
    %v2713 = vpack.c.b16 %v2373, %v2371
    %v2714 = vpack.c.b16 %v2376, %v2374
    %v2715 = vpack.c.b16 %v2377, %v2375
    %v2716 = vpack.c.b16 %v2380, %v2378
    %v2717 = vpack.c.b16 %v2381, %v2379
    %v2718 = vpack.c.b16 %v2384, %v2382
    %v2719 = vpack.c.b16 %v2385, %v2383
    %v2720 = vpack.c.b16 %v2388, %v2386
    %v2721 = vpack.c.b16 %v2389, %v2387
    %v2722 = vpack.c.b16 %v2392, %v2390
    %v2723 = vpack.c.b16 %v2393, %v2391
    %v2724 = vpack.c.b16 %v2396, %v2394
    %v2725 = vpack.c.b16 %v2397, %v2395
    %v2726 = vpack.c.b16 %v2400, %v2398
    %v2727 = vpack.c.b16 %v2401, %v2399
    %v2728 = vpack.c.b16 %v2404, %v2402
    %v2729 = vpack.c.b16 %v2405, %v2403
    %v2730 = vpack.c.b16 %v2408, %v2406
    %v2731 = vpack.c.b16 %v2409, %v2407
    %v2732 = vpack.c.b16 %v2412, %v2410
    %v2733 = vpack.c.b16 %v2413, %v2411
    %v2734 = vpack.c.b16 %v2416, %v2414
    %v2735 = vpack.c.b16 %v2417, %v2415
    %v2736 = vpack.c.b16 %v2420, %v2418
    %v2737 = vpack.c.b16 %v2421, %v2419
    %v2738 = vpack.c.b16 %v2424, %v2422
    %v2739 = vpack.c.b16 %v2425, %v2423
    %v2740 = vpack.c.b16 %v2428, %v2426
    %v2741 = vpack.c.b16 %v2429, %v2427
    %v2742 = vpack.c.b16 %v2432, %v2430
    %v2743 = vpack.c.b16 %v2433, %v2431
    %v2744 = vpack.c.b16 %v2436, %v2434
    %v2745 = vpack.c.b16 %v2437, %v2435
    %v2746 = vpack.c.b16 %v2440, %v2438
    %v2747 = vpack.c.b16 %v2441, %v2439
    %v2748 = vpack.c.b16 %v2444, %v2442
    %v2749 = vpack.c.b16 %v2445, %v2443
    %v2750 = vpack.c.b16 %v2448, %v2446
    %v2751 = vpack.c.b16 %v2449, %v2447
    %v2752 = vpack.c.b16 %v2452, %v2450
    %v2753 = vpack.c.b16 %v2453, %v2451
    %v2754 = vpack.c.b16 %v2456, %v2454
    %v2755 = vpack.c.b16 %v2457, %v2455
    %v2756 = vpack.c.b16 %v2460, %v2458
    %v2757 = vpack.c.b16 %v2461, %v2459
    %v2758 = vpack.c.b16 %v2464, %v2462
    %v2759 = vpack.c.b16 %v2465, %v2463
    %v2760 = vpack.c.b16 %v2468, %v2466
    %v2761 = vpack.c.b16 %v2469, %v2467
    %v2762 = vpack.c.b16 %v2472, %v2470
    %v2763 = vpack.c.b16 %v2473, %v2471
    %v2764 = vpack.c.b16 %v2476, %v2474
    %v2765 = vpack.c.b16 %v2477, %v2475
    %v2766 = vpack.c.b16 %v2480, %v2478
    %v2767 = vpack.c.b16 %v2481, %v2479
    %v2768 = vpack.c.b16 %v2484, %v2482
    %v2769 = vpack.c.b16 %v2485, %v2483
    %v2770 = vpack.c.b16 %v2488, %v2486
    %v2771 = vpack.c.b16 %v2489, %v2487
    %v2772 = vpack.c.b16 %v2492, %v2490
    %v2773 = vpack.c.b16 %v2493, %v2491
    %v2774 = vpack.c.b16 %v2496, %v2494
    %v2775 = vpack.c.b16 %v2497, %v2495
    %v2776 = vpack.c.b16 %v2500, %v2498
    %v2777 = vpack.c.b16 %v2501, %v2499
    %v2778 = vpack.c.b16 %v2504, %v2502
    %v2779 = vpack.c.b16 %v2505, %v2503
    %v2780 = vpack.c.b16 %v2508, %v2506
    %v2781 = vpack.c.b16 %v2509, %v2507
    %v2782 = vpack.c.b16 %v2512, %v2510
    %v2783 = vpack.c.b16 %v2513, %v2511
    %v2784 = vpack.c.b16 %v2516, %v2514
    %v2785 = vpack.c.b16 %v2517, %v2515
    %v2786 = vpack.c.b16 %v2520, %v2518
    %v2787 = vpack.c.b16 %v2521, %v2519
    %v2788 = vpack.c.b16 %v2524, %v2522
    %v2789 = vpack.c.b16 %v2525, %v2523
    %v2790 = vpack.c.b16 %v2528, %v2526
    %v2791 = vpack.c.b16 %v2529, %v2527
    %v2792 = vpack.c.b16 %v2532, %v2530
    %v2793 = vpack.c.b16 %v2533, %v2531
    %v2794 = vpack.c.b16 %v2536, %v2534
    %v2795 = vpack.c.b16 %v2537, %v2535
    %v2796 = vpack.c.b16 %v2540, %v2538
    %v2797 = vpack.c.b16 %v2541, %v2539
    %v2798 = vpack.c.b16 %v2544, %v2542
    %v2799 = vpack.c.b16 %v2545, %v2543
    %v2800 = vpack.c.b16 %v2548, %v2546
    %v2801 = vpack.c.b16 %v2549, %v2547
    %v2802 = vpack.c.b16 %v2552, %v2550
    %v2803 = vpack.c.b16 %v2553, %v2551
    %v2804 = vpack.c.b16 %v2556, %v2554
    %v2805 = vpack.c.b16 %v2557, %v2555
    %v2806 = vpack.c.b16 %v2560, %v2558
    %v2807 = vpack.c.b16 %v2561, %v2559
    %v2808 = vpack.c.b16 %v2564, %v2562
    %v2809 = vpack.c.b16 %v2565, %v2563
    %v2810 = vpack.c.b16 %v2568, %v2566
    %v2811 = vpack.c.b16 %v2569, %v2567
    %v2812 = vpack.c.b16 %v2572, %v2570
    %v2813 = vpack.c.b16 %v2573, %v2571
    %v2814 = vpack.c.b16 %v2576, %v2574
    %v2815 = vpack.c.b16 %v2577, %v2575
    %v2816 = vpack.c.b16 %v2580, %v2578
    %v2817 = vpack.c.b16 %v2581, %v2579
    %v2818 = vpack.c.b16 %v2584, %v2582
    %v2819 = vpack.c.b16 %v2585, %v2583
    %v2820 = vpack.c.b16 %v2588, %v2586
    %v2821 = vpack.c.b16 %v2589, %v2587
    %v2822 = vpack.c.b16 %v2592, %v2590
    %v2823 = vpack.c.b16 %v2593, %v2591
    %v2824 = vpack.c.b16 %v2596, %v2594
    %v2825 = vpack.c.b16 %v2597, %v2595
    %v2826 = vpack.c.b16 %v2600, %v2598
    %v2827 = vpack.c.b16 %v2601, %v2599
    %v2828 = vpack.c.b16 %v2604, %v2602
    %v2829 = vpack.c.b16 %v2605, %v2603
    %3054 = vmatprep.subr.bf16.mxu0 %v2621
    %3055 = vmatpush1.bf16.msra.mxu0 %v2620
    %3056 = vmatprep.subr.bf16.mxu0 %v2619
    %3057 = vmatpush1.bf16.msra.mxu0 %v2618
    %3058 = vmatprep.subr.bf16.mxu0 %v2617
    %3059 = vmatpush1.bf16.msra.mxu0 %v2616
    %3060 = vmatprep.subr.bf16.mxu0 %v2615
    %3061 = vmatpush1.bf16.msra.mxu0 %v2614
    %3062 = vmatprep.subr.bf16.mxu0 %v2613
    %3063 = vmatpush1.bf16.msra.mxu0 %v2612
    %3064 = vmatprep.subr.bf16.mxu0 %v2611
    %3065 = vmatpush1.bf16.msra.mxu0 %v2610
    %3066 = vmatprep.subr.bf16.mxu0 %v2609
    %3067 = vmatpush1.bf16.msra.mxu0 %v2608
    %3068 = vmatprep.subr.bf16.mxu0 %v2607
    %3069 = vmatpush1.bf16.msra.mxu0 %v2606
    %3070 = vmatprep.subr.bf16.mxu0 %v2637
    %3071 = vmatpush2.bf16.msra.mxu0 %v2636
    %3072 = vmatprep.subr.bf16.mxu0 %v2635
    %3073 = vmatpush2.bf16.msra.mxu0 %v2634
    %3074 = vmatprep.subr.bf16.mxu0 %v2633
    %3075 = vmatpush2.bf16.msra.mxu0 %v2632
    %3076 = vmatprep.subr.bf16.mxu0 %v2631
    %3077 = vmatpush2.bf16.msra.mxu0 %v2630
    %3078 = vmatprep.subr.bf16.mxu0 %v2629
    %3079 = vmatpush2.bf16.msra.mxu0 %v2628
    %3080 = vmatprep.subr.bf16.mxu0 %v2627
    %3081 = vmatpush2.bf16.msra.mxu0 %v2626
    %3082 = vmatprep.subr.bf16.mxu0 %v2625
    %3083 = vmatpush2.bf16.msra.mxu0 %v2624
    %3084 = vmatprep.subr.bf16.mxu0 %v2623
    %3085 = vmatpush2.bf16.msra.mxu0 %v2622
    %3086 = vmatprep.mubr.bf16.mxu0 %v65
    %3087 = vmatmul.mubr.bf16.gmra.mxu0 %v64
    %v3088 = vpop.f32.mrf.mxu0
    %v3089 = vadd.f32 0.0, %v3088
    %v3090 = vpop.f32.mrf.mxu0
    %v3091 = vadd.f32 0.0, %v3090
    %v3092 = vpop.f32.mrf.mxu0
    %v3093 = vpop.f32.mrf.mxu0
    %3094 = vdwg.mxu0
    %3095 = vmatprep.subr.bf16.mxu0 %v2653
    %3096 = vmatpush1.bf16.msra.mxu0 %v2652
    %3097 = vmatprep.subr.bf16.mxu0 %v2651
    %3098 = vmatpush1.bf16.msra.mxu0 %v2650
    %3099 = vmatprep.subr.bf16.mxu0 %v2649
    %3100 = vmatpush1.bf16.msra.mxu0 %v2648
    %3101 = vmatprep.subr.bf16.mxu0 %v2647
    %3102 = vmatpush1.bf16.msra.mxu0 %v2646
    %3103 = vmatprep.subr.bf16.mxu0 %v2645
    %3104 = vmatpush1.bf16.msra.mxu0 %v2644
    %3105 = vmatprep.subr.bf16.mxu0 %v2643
    %3106 = vmatpush1.bf16.msra.mxu0 %v2642
    %3107 = vmatprep.subr.bf16.mxu0 %v2641
    %3108 = vmatpush1.bf16.msra.mxu0 %v2640
    %3109 = vmatprep.subr.bf16.mxu0 %v2639
    %3110 = vmatpush1.bf16.msra.mxu0 %v2638
    %3111 = vmatprep.subr.bf16.mxu0 %v2669
    %3112 = vmatpush2.bf16.msra.mxu0 %v2668
    %3113 = vmatprep.subr.bf16.mxu0 %v2667
    %3114 = vmatpush2.bf16.msra.mxu0 %v2666
    %3115 = vmatprep.subr.bf16.mxu0 %v2665
    %3116 = vmatpush2.bf16.msra.mxu0 %v2664
    %3117 = vmatprep.subr.bf16.mxu0 %v2663
    %3118 = vmatpush2.bf16.msra.mxu0 %v2662
    %3119 = vmatprep.subr.bf16.mxu0 %v2661
    %3120 = vmatpush2.bf16.msra.mxu0 %v2660
    %3121 = vmatprep.subr.bf16.mxu0 %v2659
    %3122 = vmatpush2.bf16.msra.mxu0 %v2658
    %3123 = vmatprep.subr.bf16.mxu0 %v2657
    %3124 = vmatpush2.bf16.msra.mxu0 %v2656
    %3125 = vmatprep.subr.bf16.mxu0 %v2655
    %3126 = vmatpush2.bf16.msra.mxu0 %v2654
    %3127 = vmatprep.mubr.bf16.mxu0 %v67
    %3128 = vmatmul.mubr.bf16.gmra.mxu0 %v66
    %v3129 = vpop.f32.mrf.mxu0
    %v3130 = vadd.f32 %v3089, %v3129
    %v3131 = vpop.f32.mrf.mxu0
    %v3132 = vadd.f32 %v3091, %v3131
    %v3133 = vpop.f32.mrf.mxu0
    %v3134 = vpop.f32.mrf.mxu0
    %3135 = vdwg.mxu0
    %3136 = vmatprep.subr.bf16.mxu0 %v2685
    %3137 = vmatpush1.bf16.msra.mxu0 %v2684
    %3138 = vmatprep.subr.bf16.mxu0 %v2683
    %3139 = vmatpush1.bf16.msra.mxu0 %v2682
    %3140 = vmatprep.subr.bf16.mxu0 %v2681
    %3141 = vmatpush1.bf16.msra.mxu0 %v2680
    %3142 = vmatprep.subr.bf16.mxu0 %v2679
    %3143 = vmatpush1.bf16.msra.mxu0 %v2678
    %3144 = vmatprep.subr.bf16.mxu0 %v2677
    %3145 = vmatpush1.bf16.msra.mxu0 %v2676
    %3146 = vmatprep.subr.bf16.mxu0 %v2675
    %3147 = vmatpush1.bf16.msra.mxu0 %v2674
    %3148 = vmatprep.subr.bf16.mxu0 %v2673
    %3149 = vmatpush1.bf16.msra.mxu0 %v2672
    %3150 = vmatprep.subr.bf16.mxu0 %v2671
    %3151 = vmatpush1.bf16.msra.mxu0 %v2670
    %3152 = vmatprep.subr.bf16.mxu0 %v2701
    %3153 = vmatpush2.bf16.msra.mxu0 %v2700
    %3154 = vmatprep.subr.bf16.mxu0 %v2699
    %3155 = vmatpush2.bf16.msra.mxu0 %v2698
    %3156 = vmatprep.subr.bf16.mxu0 %v2697
    %3157 = vmatpush2.bf16.msra.mxu0 %v2696
    %3158 = vmatprep.subr.bf16.mxu0 %v2695
    %3159 = vmatpush2.bf16.msra.mxu0 %v2694
    %3160 = vmatprep.subr.bf16.mxu0 %v2693
    %3161 = vmatpush2.bf16.msra.mxu0 %v2692
    %3162 = vmatprep.subr.bf16.mxu0 %v2691
    %3163 = vmatpush2.bf16.msra.mxu0 %v2690
    %3164 = vmatprep.subr.bf16.mxu0 %v2689
    %3165 = vmatpush2.bf16.msra.mxu0 %v2688
    %3166 = vmatprep.subr.bf16.mxu0 %v2687
    %3167 = vmatpush2.bf16.msra.mxu0 %v2686
    %3168 = vmatprep.mubr.bf16.mxu0 %v69
    %3169 = vmatmul.mubr.bf16.gmra.mxu0 %v68
    %v3170 = vpop.f32.mrf.mxu0
    %v3171 = vadd.f32 %v3130, %v3170
    %v3172 = vpop.f32.mrf.mxu0
    %v3173 = vadd.f32 %v3132, %v3172
    %v3174 = vpop.f32.mrf.mxu0
    %v3175 = vpop.f32.mrf.mxu0
    %3176 = vdwg.mxu0
    %3177 = vmatprep.subr.bf16.mxu0 %v2717
    %3178 = vmatpush1.bf16.msra.mxu0 %v2716
    %3179 = vmatprep.subr.bf16.mxu0 %v2715
    %3180 = vmatpush1.bf16.msra.mxu0 %v2714
    %3181 = vmatprep.subr.bf16.mxu0 %v2713
    %3182 = vmatpush1.bf16.msra.mxu0 %v2712
    %3183 = vmatprep.subr.bf16.mxu0 %v2711
    %3184 = vmatpush1.bf16.msra.mxu0 %v2710
    %3185 = vmatprep.subr.bf16.mxu0 %v2709
    %3186 = vmatpush1.bf16.msra.mxu0 %v2708
    %3187 = vmatprep.subr.bf16.mxu0 %v2707
    %3188 = vmatpush1.bf16.msra.mxu0 %v2706
    %3189 = vmatprep.subr.bf16.mxu0 %v2705
    %3190 = vmatpush1.bf16.msra.mxu0 %v2704
    %3191 = vmatprep.subr.bf16.mxu0 %v2703
    %3192 = vmatpush1.bf16.msra.mxu0 %v2702
    %3193 = vmatprep.subr.bf16.mxu0 %v2733
    %3194 = vmatpush2.bf16.msra.mxu0 %v2732
    %3195 = vmatprep.subr.bf16.mxu0 %v2731
    %3196 = vmatpush2.bf16.msra.mxu0 %v2730
    %3197 = vmatprep.subr.bf16.mxu0 %v2729
    %3198 = vmatpush2.bf16.msra.mxu0 %v2728
    %3199 = vmatprep.subr.bf16.mxu0 %v2727
    %3200 = vmatpush2.bf16.msra.mxu0 %v2726
    %3201 = vmatprep.subr.bf16.mxu0 %v2725
    %3202 = vmatpush2.bf16.msra.mxu0 %v2724
    %3203 = vmatprep.subr.bf16.mxu0 %v2723
    %3204 = vmatpush2.bf16.msra.mxu0 %v2722
    %3205 = vmatprep.subr.bf16.mxu0 %v2721
    %3206 = vmatpush2.bf16.msra.mxu0 %v2720
    %3207 = vmatprep.subr.bf16.mxu0 %v2719
    %3208 = vmatpush2.bf16.msra.mxu0 %v2718
    %3209 = vmatprep.mubr.bf16.mxu0 %v71
    %3210 = vmatmul.mubr.bf16.gmra.mxu0 %v70
    %v3211 = vpop.f32.mrf.mxu0
    %v3212 = vadd.f32 %v3171, %v3211
    %v3213 = vpop.f32.mrf.mxu0
    %v3214 = vadd.f32 %v3173, %v3213
    %v3215 = vpop.f32.mrf.mxu0
    %v3216 = vpop.f32.mrf.mxu0
    %3217 = vdwg.mxu0
    %3218 = vmatprep.subr.bf16.mxu0 %v2749
    %3219 = vmatpush1.bf16.msra.mxu0 %v2748
    %3220 = vmatprep.subr.bf16.mxu0 %v2747
    %3221 = vmatpush1.bf16.msra.mxu0 %v2746
    %3222 = vmatprep.subr.bf16.mxu0 %v2745
    %3223 = vmatpush1.bf16.msra.mxu0 %v2744
    %3224 = vmatprep.subr.bf16.mxu0 %v2743
    %3225 = vmatpush1.bf16.msra.mxu0 %v2742
    %3226 = vmatprep.subr.bf16.mxu0 %v2741
    %3227 = vmatpush1.bf16.msra.mxu0 %v2740
    %3228 = vmatprep.subr.bf16.mxu0 %v2739
    %3229 = vmatpush1.bf16.msra.mxu0 %v2738
    %3230 = vmatprep.subr.bf16.mxu0 %v2737
    %3231 = vmatpush1.bf16.msra.mxu0 %v2736
    %3232 = vmatprep.subr.bf16.mxu0 %v2735
    %3233 = vmatpush1.bf16.msra.mxu0 %v2734
    %3234 = vmatprep.subr.bf16.mxu0 %v2765
    %3235 = vmatpush2.bf16.msra.mxu0 %v2764
    %3236 = vmatprep.subr.bf16.mxu0 %v2763
    %3237 = vmatpush2.bf16.msra.mxu0 %v2762
    %3238 = vmatprep.subr.bf16.mxu0 %v2761
    %3239 = vmatpush2.bf16.msra.mxu0 %v2760
    %3240 = vmatprep.subr.bf16.mxu0 %v2759
    %3241 = vmatpush2.bf16.msra.mxu0 %v2758
    %3242 = vmatprep.subr.bf16.mxu0 %v2757
    %3243 = vmatpush2.bf16.msra.mxu0 %v2756
    %3244 = vmatprep.subr.bf16.mxu0 %v2755
    %3245 = vmatpush2.bf16.msra.mxu0 %v2754
    %3246 = vmatprep.subr.bf16.mxu0 %v2753
    %3247 = vmatpush2.bf16.msra.mxu0 %v2752
    %3248 = vmatprep.subr.bf16.mxu0 %v2751
    %3249 = vmatpush2.bf16.msra.mxu0 %v2750
    %3250 = vmatprep.mubr.bf16.mxu0 %v73
    %3251 = vmatmul.mubr.bf16.gmra.mxu0 %v72
    %v3252 = vpop.f32.mrf.mxu0
    %v3253 = vadd.f32 %v3212, %v3252
    %v3254 = vpop.f32.mrf.mxu0
    %v3255 = vadd.f32 %v3214, %v3254
    %v3256 = vpop.f32.mrf.mxu0
    %v3257 = vpop.f32.mrf.mxu0
    %3258 = vdwg.mxu0
    %3259 = vmatprep.subr.bf16.mxu0 %v2781
    %3260 = vmatpush1.bf16.msra.mxu0 %v2780
    %3261 = vmatprep.subr.bf16.mxu0 %v2779
    %3262 = vmatpush1.bf16.msra.mxu0 %v2778
    %3263 = vmatprep.subr.bf16.mxu0 %v2777
    %3264 = vmatpush1.bf16.msra.mxu0 %v2776
    %3265 = vmatprep.subr.bf16.mxu0 %v2775
    %3266 = vmatpush1.bf16.msra.mxu0 %v2774
    %3267 = vmatprep.subr.bf16.mxu0 %v2773
    %3268 = vmatpush1.bf16.msra.mxu0 %v2772
    %3269 = vmatprep.subr.bf16.mxu0 %v2771
    %3270 = vmatpush1.bf16.msra.mxu0 %v2770
    %3271 = vmatprep.subr.bf16.mxu0 %v2769
    %3272 = vmatpush1.bf16.msra.mxu0 %v2768
    %3273 = vmatprep.subr.bf16.mxu0 %v2767
    %3274 = vmatpush1.bf16.msra.mxu0 %v2766
    %3275 = vmatprep.subr.bf16.mxu0 %v2797
    %3276 = vmatpush2.bf16.msra.mxu0 %v2796
    %3277 = vmatprep.subr.bf16.mxu0 %v2795
    %3278 = vmatpush2.bf16.msra.mxu0 %v2794
    %3279 = vmatprep.subr.bf16.mxu0 %v2793
    %3280 = vmatpush2.bf16.msra.mxu0 %v2792
    %3281 = vmatprep.subr.bf16.mxu0 %v2791
    %3282 = vmatpush2.bf16.msra.mxu0 %v2790
    %3283 = vmatprep.subr.bf16.mxu0 %v2789
    %3284 = vmatpush2.bf16.msra.mxu0 %v2788
    %3285 = vmatprep.subr.bf16.mxu0 %v2787
    %3286 = vmatpush2.bf16.msra.mxu0 %v2786
    %3287 = vmatprep.subr.bf16.mxu0 %v2785
    %3288 = vmatpush2.bf16.msra.mxu0 %v2784
    %3289 = vmatprep.subr.bf16.mxu0 %v2783
    %3290 = vmatpush2.bf16.msra.mxu0 %v2782
    %3291 = vmatprep.mubr.bf16.mxu0 %v75
    %3292 = vmatmul.mubr.bf16.gmra.mxu0 %v74
    %v3293 = vpop.f32.mrf.mxu0
    %v3294 = vadd.f32 %v3253, %v3293
    %v3295 = vpop.f32.mrf.mxu0
    %v3296 = vadd.f32 %v3255, %v3295
    %v3297 = vpop.f32.mrf.mxu0
    %v3298 = vpop.f32.mrf.mxu0
    %3299 = vdwg.mxu0
    %3300 = vmatprep.subr.bf16.mxu0 %v2813
    %3301 = vmatpush1.bf16.msra.mxu0 %v2812
    %3302 = vmatprep.subr.bf16.mxu0 %v2811
    %3303 = vmatpush1.bf16.msra.mxu0 %v2810
    %3304 = vmatprep.subr.bf16.mxu0 %v2809
    %3305 = vmatpush1.bf16.msra.mxu0 %v2808
    %3306 = vmatprep.subr.bf16.mxu0 %v2807
    %3307 = vmatpush1.bf16.msra.mxu0 %v2806
    %3308 = vmatprep.subr.bf16.mxu0 %v2805
    %3309 = vmatpush1.bf16.msra.mxu0 %v2804
    %3310 = vmatprep.subr.bf16.mxu0 %v2803
    %3311 = vmatpush1.bf16.msra.mxu0 %v2802
    %3312 = vmatprep.subr.bf16.mxu0 %v2801
    %3313 = vmatpush1.bf16.msra.mxu0 %v2800
    %3314 = vmatprep.subr.bf16.mxu0 %v2799
    %3315 = vmatpush1.bf16.msra.mxu0 %v2798
    %3316 = vmatprep.subr.bf16.mxu0 %v2829
    %3317 = vmatpush2.bf16.msra.mxu0 %v2828
    %3318 = vmatprep.subr.bf16.mxu0 %v2827
    %3319 = vmatpush2.bf16.msra.mxu0 %v2826
    %3320 = vmatprep.subr.bf16.mxu0 %v2825
    %3321 = vmatpush2.bf16.msra.mxu0 %v2824
    %3322 = vmatprep.subr.bf16.mxu0 %v2823
    %3323 = vmatpush2.bf16.msra.mxu0 %v2822
    %3324 = vmatprep.subr.bf16.mxu0 %v2821
    %3325 = vmatpush2.bf16.msra.mxu0 %v2820
    %3326 = vmatprep.subr.bf16.mxu0 %v2819
    %3327 = vmatpush2.bf16.msra.mxu0 %v2818
    %3328 = vmatprep.subr.bf16.mxu0 %v2817
    %3329 = vmatpush2.bf16.msra.mxu0 %v2816
    %3330 = vmatprep.subr.bf16.mxu0 %v2815
    %3331 = vmatpush2.bf16.msra.mxu0 %v2814
    %3332 = vmatprep.mubr.bf16.mxu0 %v77
    %3333 = vmatmul.mubr.bf16.gmra.mxu0 %v76
    %v3334 = vpop.f32.mrf.mxu0
    %v3335 = vadd.f32 %v3294, %v3334
    %v3336 = vpop.f32.mrf.mxu0
    %v3337 = vadd.f32 %v3296, %v3336
    %v3338 = vpop.f32.mrf.mxu0
    %v3339 = vpop.f32.mrf.mxu0
    %3340 = vdwg.mxu0
    %v3341 = vld [vmem:[%s2] sm:$0x77]
    %v3343 = vcombine.high %v3341, %v3341
    %v3345 = vsub.f32 %v1703, %v3341
    %v3346 = vsub.f32 %v1705, %v3343
    %s3347 = scalar_lea.vmem %s2, 8
    %v3348 = vld [vmem:[%s3347] sm:$0x77]
    %v3350 = vcombine.high %v3348, %v3348
    %v3352 = vsub.f32 %v3335, %v3348
    %v3353 = vsub.f32 %v3337, %v3350
    %v3354 = vmul.f32 %v3345, %v3345
    %v3355 = vmul.f32 %v3346, %v3346
    %vm3356 = vcmask 1042432
    %v3357 = vsel %vm3356, %v3354, 0.0
    %v3358 = vsel %vm3356, %v3355, 0.0
    %v3359 = vadd.f32 %v3357, %v3358
    %3360 = vadd.xlane.f32.xlu0 %v3359
    %v3361 = vpop.xlane.xlu0 %3360
    %v3362 = vrot.slane %v3361, 4
    %v3363 = vadd.f32 %v3361, %v3362
    %v3364 = vrot.slane %v3363, 2
    %v3365 = vadd.f32 %v3363, %v3364
    %v3366 = vrot.slane %v3365, 1
    %v3367 = vadd.f32 %v3365, %v3366
    %s3368 = vtos %v3367
    %s3369 = scalar_lea.smem [#allocation5], 0
    %3370 = sst [smem:[%s3369]] %s3368
    %v3371 = vmul.f32 %v3352, %v3352
    %v3372 = vmul.f32 %v3353, %v3353
    %v3373 = vsel %vm3356, %v3371, 0.0
    %v3374 = vsel %vm3356, %v3372, 0.0
    %v3375 = vadd.f32 %v3373, %v3374
    %3376 = vadd.xlane.f32.xlu0 %v3375
    %v3377 = vpop.xlane.xlu0 %3376
    %v3378 = vrot.slane %v3377, 4
    %v3379 = vadd.f32 %v3377, %v3378
    %v3380 = vrot.slane %v3379, 2
    %v3381 = vadd.f32 %v3379, %v3380
    %v3382 = vrot.slane %v3381, 1
    %v3383 = vadd.f32 %v3381, %v3382
    %s3384 = vtos %v3383
    %s3385 = scalar_lea.smem [#allocation5], 1
    %3386 = sst [smem:[%s3385]] %s3384
    // Predicated region
    $region18: #{_bird_loss_impl.1} parent=1 // pred_check
      _
    $region19: #{_bird_loss_impl.1} parent=1 // pred_check_branch
      %3388 = sbr.rel (0) target = $region21
    $region20: #{_bird_loss_impl.1} parent=1 // pred_region
      %s3390 = ssub.s32 16, 16
      %3391 = vsyncadd [#allocation4], %s3390
      %s3393 = sshll.u32 %s3, 4
      %s3394 = int_to_ptr.vmem [resolvable:$true] %s3393
      %3396 = dma.smem_to_vmem [#allocation5], 16, %s3394, [#allocation4]
    $region21: #{_bird_loss_impl.1} parent=1 // pred_fallthru
      _
    // Predicated region
    $region22: #{_bird_loss_impl.1} parent=1 // pred_check
      _
    $region23: #{_bird_loss_impl.1} parent=1 // pred_check_branch
      %3398 = sbr.rel (0) target = $region25
    $region24: #{_bird_loss_impl.1} parent=1 // pred_region
      %3399 = dma.done [#allocation4], 16
    $region25: #{_bird_loss_impl.1} parent=1 // pred_fallthru
      _
    %3400 = sfence
    %3401 = vsyncpa [#allocation3], 1
    %3402 = vsyncpa [#allocation4], 1

</llo_original>
